<compile_context>
chip_gen: v5e
topology: v5e:2x2
jax: 0.10.0
libtpu: 0.0.40
codegen_flags: <defaults>
</compile_context>

<pallas_src>
import functools
import numpy as np
import jax
import jax.numpy as jnp
from jax.experimental import pallas as pl
from jax.experimental.pallas import tpu as pltpu


# ----------------------------- host-side operator builders -------------------

def _interp_matrix(out_size, in_size):
    """nn.Upsample(mode='bilinear', align_corners=False) as an (out,in) matrix."""
    scale = in_size / out_size
    u = np.zeros((out_size, in_size), np.float32)
    for o in range(out_size):
        src = max((o + 0.5) * scale - 0.5, 0.0)
        i0 = min(int(np.floor(src)), in_size - 1)
        lam = src - i0
        i1 = min(i0 + 1, in_size - 1)
        u[o, i0] += 1.0 - lam
        u[o, i1] += lam
    return u


def _pool_select_matrices(H, W):
    """4 one-hot (H*W, Hp*Wp) matrices; elementwise max over them == MaxPool2d(2,2)."""
    Hp, Wp = H // 2, W // 2
    s = np.zeros((4, H * W, Hp * Wp), np.float32)
    for dy in range(2):
        for dx in range(2):
            k = dy * 2 + dx
            for i in range(Hp):
                for j in range(Wp):
                    s[k, (2 * i + dy) * W + (2 * j + dx), i * Wp + j] = 1.0
    return s


def _shift_matrices(Hp, Wp):
    """9 combined (Hp*Wp, Hp*Wp) 0/1 matrices: zero-padded 3x3 window shifts."""
    t = np.zeros((9, Hp * Wp, Hp * Wp), np.float32)
    for ky in range(3):
        for kx in range(3):
            k = ky * 3 + kx
            for r in range(Hp):
                rr = r + ky - 1
                if not 0 <= rr < Hp:
                    continue
                for c in range(Wp):
                    cc = c + kx - 1
                    if not 0 <= cc < Wp:
                        continue
                    t[k, rr * Wp + cc, r * Wp + c] = 1.0
    return t


def _upsample_matrix(H, W):
    """(Hp*Wp, H*W) bilinear x2 upsample operator (kron of 1-D interps)."""
    Hp, Wp = H // 2, W // 2
    uh = _interp_matrix(H, Hp)          # (H, Hp)
    uw = _interp_matrix(W, Wp)          # (W, Wp)
    return np.ascontiguousarray(np.kron(uh, uw).T)   # (Hp*Wp, H*W)


# --------------------------------- the kernel --------------------------------

def _res_unit_kernel(x_ref, sel_ref, shf_ref, w_ref, b_ref, up_ref, o_ref):
    f32, bf16 = jnp.float32, jnp.bfloat16
    dot32 = functools.partial(jnp.dot, preferred_element_type=f32)

    # Whole batch-stacked slab, read once (residual reuse, single cast).
    x32 = x_ref[...]                          # (BC, HW) f32
    xb = x32.astype(bf16)                     # bf16 MXU feed

    # MaxPool2d(2,2): 4 one-hot column selections (MXU) + elementwise max (VPU).
    pooled = dot32(xb, sel_ref[0])
    for k in range(1, 4):
        pooled = jnp.maximum(pooled, dot32(xb, sel_ref[k]))
    pooled16 = pooled.astype(bf16)            # (BC, HpWp); cast is exact

    # Conv2d(C, C, 3, padding=1) on the stacked slab: per tap a 0/1 window
    # shift (MXU) then a block-diagonal (BC, BC) channel mix (MXU), f32 acc.
    acc = None
    for k in range(9):
        shifted = dot32(pooled16, shf_ref[k]).astype(bf16)   # exact selection
        contrib = dot32(w_ref[k], shifted)
        acc = contrib if acc is None else acc + contrib
    conv = acc + b_ref[...]                   # (BC, HpWp) + (BC, 1), one add

    # Bilinear x2 upsample as one matmul, sigmoid on EUP, residual mul on VPU.
    gate = jax.nn.sigmoid(dot32(conv.astype(bf16), up_ref[...]))   # (BC, HW)
    o_ref[...] = (x32 * gate).astype(o_ref.dtype)


# --------------------------------- wrapper ------------------------------------

def _pick_block_batch(n, c, hw, itemsize=4, budget_bytes=8 << 20):
    """Images per grid step.

    Keep the (B*C, HW) x/out block sublane-legal (B*C % 8 == 0, or the block
    spans the full array), keep its footprint under a VMEM budget, and when
    possible leave >= 2 grid steps so the "parallel" axis can use both v7x TCs.
    """
    legal = [b for b in range(1, n + 1)
             if n % b == 0 and ((b * c) % 8 == 0 or b == n)]
    fits = [b for b in legal if 2 * b * c * hw * itemsize <= budget_bytes]
    cands = fits if fits else legal[:1]
    multi = [b for b in cands if n // b >= 2]
    return max(multi) if multi else max(cands)


def res_unit_forward(x, conv_w, conv_b):
    """res_unit.forward for up_size=None (scale_factor=2 bilinear upsample)."""
    N, C, H, W = x.shape
    assert H % 2 == 0 and W % 2 == 0
    Hp, Wp = H // 2, W // 2
    HW, HpWp = H * W, Hp * Wp

    B = _pick_block_batch(N, C, HW)
    BC = B * C

    # Grid-invariant operators, fed to the MXU as bf16 (0/1 and the 0.25/0.75
    # interpolation weights are exact in bf16).
    sel = jnp.asarray(_pool_select_matrices(H, W), jnp.bfloat16)   # (4, HW, HpWp)
    shf = jnp.asarray(_shift_matrices(Hp, Wp), jnp.bfloat16)       # (9, HpWp, HpWp)
    upm = jnp.asarray(_upsample_matrix(H, W), jnp.bfloat16)        # (HpWp, HW)

    # Conv taps as 9 block-diagonal (BC, BC) matrices (one (C, C) block per
    # image in the slab) so the channel mix is one matmul per tap for the whole
    # block.  Bias is a (BC, 1) f32 column, broadcast over lanes in-kernel.
    w9 = jnp.transpose(conv_w.astype(jnp.float32), (2, 3, 0, 1)).reshape(9, C, C)
    eye_b = jnp.eye(B, dtype=jnp.float32)
    wblk = jax.vmap(lambda m: jnp.kron(eye_b, m))(w9).astype(jnp.bfloat16)
    bias = jnp.tile(conv_b.astype(jnp.float32), B).reshape(BC, 1)

    xf = x.reshape(N * C, HW)      # lane-dense flattened spatial (free reshape)

    out = pl.pallas_call(
        _res_unit_kernel,
        out_shape=jax.ShapeDtypeStruct((N * C, HW), x.dtype),
        grid=(N // B,),
        in_specs=[
            pl.BlockSpec((BC, HW), lambda n: (n, 0)),
            # The operands below are grid-invariant (constant index maps); with
            # a multi-step grid they could be single-buffered
            # (pipeline_mode=pl.Buffered(1)) to halve their VMEM footprint.
            pl.BlockSpec((4, HW, HpWp), lambda n: (0, 0, 0)),
            pl.BlockSpec((9, HpWp, HpWp), lambda n: (0, 0, 0)),
            pl.BlockSpec((9, BC, BC), lambda n: (0, 0, 0)),
            pl.BlockSpec((BC, 1), lambda n: (0, 0)),
            pl.BlockSpec((HpWp, HW), lambda n: (0, 0)),
        ],
        out_specs=pl.BlockSpec((BC, HW), lambda n: (n, 0)),
        compiler_params=pltpu.CompilerParams(
            dimension_semantics=("parallel",)),   # megacore-shardable when grid > 1
    )(xf, sel, shf, wblk, bias, upm)
    return out.reshape(N, C, H, W)


# ------------------------------ pure-JAX reference ----------------------------

def res_unit_reference(x, conv_w, conv_b):
    N, C, H, W = x.shape
    Hp, Wp = H // 2, W // 2
    pooled = jax.lax.reduce_window(x, -jnp.inf, jax.lax.max,
                                   (1, 1, 2, 2), (1, 1, 2, 2), "VALID")
    conv = jax.lax.conv_general_dilated(
        pooled, conv_w, window_strides=(1, 1), padding="SAME",
        dimension_numbers=("NCHW", "OIHW", "NCHW"))
    conv = conv + conv_b[None, :, None, None]
    uh = jnp.asarray(_interp_matrix(H, Hp))
    uw = jnp.asarray(_interp_matrix(W, Wp))
    up = jnp.einsum("hi,nciw->nchw", uh, jnp.einsum("ncij,wj->nciw", conv, uw))
    return x * jax.nn.sigmoid(up)


if __name__ == "__main__":
    key = jax.random.PRNGKey(0)
    kx, kw, kb = jax.random.split(key, 3)
    N, C, H, W = 2, 4, 16, 16
    x = jax.random.normal(kx, (N, C, H, W), jnp.float32)

    # Deterministic Conv2d(C, C, 3) parameters (synthetic, not a checkpoint).
    fan_in = C * 3 * 3
    bound = float(1.0 / np.sqrt(fan_in))
    conv_w = jax.random.uniform(kw, (C, C, 3, 3), jnp.float32, -bound, bound)
    conv_b = jax.random.uniform(kb, (C,), jnp.float32, -bound, bound)

    out = res_unit_forward(x, conv_w, conv_b)
    out = jax.block_until_ready(out)

    ref = res_unit_reference(x, conv_w, conv_b)
    assert out.shape == (N, C, H, W)
    # bf16 MXU operands (per perf review) => compare at bf16-level tolerance.
    if not jnp.allclose(out, ref, atol=2e-2, rtol=2e-2):
        raise AssertionError(
            f"mismatch vs reference, max abs err {jnp.max(jnp.abs(out - ref))}")
    print("KERNEL_OK")
</pallas_src>

<mosaic_0001>
module attributes {stable_mosaic.version = 11 : i64} {
  func.func @_res_unit_kernel(%arg0: i32, %arg1: memref<8x256xf32, #tpu.memory_space<vmem>>, %arg2: memref<4x256x64xbf16, #tpu.memory_space<vmem>>, %arg3: memref<9x64x64xbf16, #tpu.memory_space<vmem>>, %arg4: memref<9x8x8xbf16, #tpu.memory_space<vmem>>, %arg5: memref<8x1xf32, #tpu.memory_space<vmem>>, %arg6: memref<64x256xbf16, #tpu.memory_space<vmem>>, %arg7: memref<8x256xf32, #tpu.memory_space<vmem>>) attributes {dimension_semantics = [#tpu.dimension_semantics<parallel>], iteration_bounds = array<i64: 1>, scalar_prefetch = 0 : i64, scratch_operands = 0 : i64, tpu.core_type = #tpu.core_type<tc>, window_params = [{transform_indices = @transform_0, window_bounds = array<i64: 8, 256>}, {pipeline_mode = #tpu.pipeline_mode<synchronous>, transform_indices = @transform_1, window_bounds = array<i64: 4, 256, 64>}, {pipeline_mode = #tpu.pipeline_mode<synchronous>, transform_indices = @transform_2, window_bounds = array<i64: 9, 64, 64>}, {pipeline_mode = #tpu.pipeline_mode<synchronous>, transform_indices = @transform_3, window_bounds = array<i64: 9, 8, 8>}, {pipeline_mode = #tpu.pipeline_mode<synchronous>, transform_indices = @transform_4, window_bounds = array<i64: 8, 1>}, {pipeline_mode = #tpu.pipeline_mode<synchronous>, transform_indices = @transform_5, window_bounds = array<i64: 64, 256>}, {transform_indices = @transform_6, window_bounds = array<i64: 8, 256>}]} {
    %c0 = arith.constant 0 : index
    %c0_0 = arith.constant 0 : index
    %0 = vector.load %arg1[%c0, %c0_0] : memref<8x256xf32, #tpu.memory_space<vmem>>, vector<8x256xf32>
    %1 = arith.truncf %0 : vector<8x256xf32> to vector<8x256xbf16>
    %c0_1 = arith.constant 0 : index
    %c0_2 = arith.constant 0 : index
    %c0_3 = arith.constant 0 : index
    %2 = vector.load %arg2[%c0_1, %c0_2, %c0_3] : memref<4x256x64xbf16, #tpu.memory_space<vmem>>, vector<1x256x64xbf16>
    %3 = vector.shape_cast %2 : vector<1x256x64xbf16> to vector<256x64xbf16>
    %cst = arith.constant dense<0.000000e+00> : vector<8x64xf32>
    %4 = tpu.matmul %1, %3, %cst {dimension_numbers = #tpu.dot_dimension_numbers<[1], [0], [0], [1], [0, 0, 1, 1], [], []>} : vector<8x256xbf16>, vector<256x64xbf16>, vector<8x64xf32> -> vector<8x64xf32>
    %c1 = arith.constant 1 : index
    %c0_4 = arith.constant 0 : index
    %c0_5 = arith.constant 0 : index
    %5 = vector.load %arg2[%c1, %c0_4, %c0_5] : memref<4x256x64xbf16, #tpu.memory_space<vmem>>, vector<1x256x64xbf16>
    %6 = vector.shape_cast %5 : vector<1x256x64xbf16> to vector<256x64xbf16>
    %cst_6 = arith.constant dense<0.000000e+00> : vector<8x64xf32>
    %7 = tpu.matmul %1, %6, %cst_6 {dimension_numbers = #tpu.dot_dimension_numbers<[1], [0], [0], [1], [0, 0, 1, 1], [], []>} : vector<8x256xbf16>, vector<256x64xbf16>, vector<8x64xf32> -> vector<8x64xf32>
    %8 = arith.maximumf %4, %7 : vector<8x64xf32>
    %c2 = arith.constant 2 : index
    %c0_7 = arith.constant 0 : index
    %c0_8 = arith.constant 0 : index
    %9 = vector.load %arg2[%c2, %c0_7, %c0_8] : memref<4x256x64xbf16, #tpu.memory_space<vmem>>, vector<1x256x64xbf16>
    %10 = vector.shape_cast %9 : vector<1x256x64xbf16> to vector<256x64xbf16>
    %cst_9 = arith.constant dense<0.000000e+00> : vector<8x64xf32>
    %11 = tpu.matmul %1, %10, %cst_9 {dimension_numbers = #tpu.dot_dimension_numbers<[1], [0], [0], [1], [0, 0, 1, 1], [], []>} : vector<8x256xbf16>, vector<256x64xbf16>, vector<8x64xf32> -> vector<8x64xf32>
    %12 = arith.maximumf %8, %11 : vector<8x64xf32>
    %c3 = arith.constant 3 : index
    %c0_10 = arith.constant 0 : index
    %c0_11 = arith.constant 0 : index
    %13 = vector.load %arg2[%c3, %c0_10, %c0_11] : memref<4x256x64xbf16, #tpu.memory_space<vmem>>, vector<1x256x64xbf16>
    %14 = vector.shape_cast %13 : vector<1x256x64xbf16> to vector<256x64xbf16>
    %cst_12 = arith.constant dense<0.000000e+00> : vector<8x64xf32>
    %15 = tpu.matmul %1, %14, %cst_12 {dimension_numbers = #tpu.dot_dimension_numbers<[1], [0], [0], [1], [0, 0, 1, 1], [], []>} : vector<8x256xbf16>, vector<256x64xbf16>, vector<8x64xf32> -> vector<8x64xf32>
    %16 = arith.maximumf %12, %15 : vector<8x64xf32>
    %17 = arith.truncf %16 : vector<8x64xf32> to vector<8x64xbf16>
    %c0_13 = arith.constant 0 : index
    %c0_14 = arith.constant 0 : index
    %c0_15 = arith.constant 0 : index
    %18 = vector.load %arg3[%c0_13, %c0_14, %c0_15] : memref<9x64x64xbf16, #tpu.memory_space<vmem>>, vector<1x64x64xbf16>
    %19 = vector.shape_cast %18 : vector<1x64x64xbf16> to vector<64x64xbf16>
    %cst_16 = arith.constant dense<0.000000e+00> : vector<8x64xf32>
    %20 = tpu.matmul %17, %19, %cst_16 {dimension_numbers = #tpu.dot_dimension_numbers<[1], [0], [0], [1], [0, 0, 1, 1], [], []>} : vector<8x64xbf16>, vector<64x64xbf16>, vector<8x64xf32> -> vector<8x64xf32>
    %21 = arith.truncf %20 : vector<8x64xf32> to vector<8x64xbf16>
    %c0_17 = arith.constant 0 : index
    %c0_18 = arith.constant 0 : index
    %c0_19 = arith.constant 0 : index
    %22 = vector.load %arg4[%c0_17, %c0_18, %c0_19] : memref<9x8x8xbf16, #tpu.memory_space<vmem>>, vector<1x8x8xbf16>
    %23 = vector.shape_cast %22 : vector<1x8x8xbf16> to vector<8x8xbf16>
    %cst_20 = arith.constant dense<0.000000e+00> : vector<8x64xf32>
    %24 = tpu.matmul %23, %21, %cst_20 {dimension_numbers = #tpu.dot_dimension_numbers<[1], [0], [0], [1], [0, 0, 1, 1], [], []>} : vector<8x8xbf16>, vector<8x64xbf16>, vector<8x64xf32> -> vector<8x64xf32>
    %c1_21 = arith.constant 1 : index
    %c0_22 = arith.constant 0 : index
    %c0_23 = arith.constant 0 : index
    %25 = vector.load %arg3[%c1_21, %c0_22, %c0_23] : memref<9x64x64xbf16, #tpu.memory_space<vmem>>, vector<1x64x64xbf16>
    %26 = vector.shape_cast %25 : vector<1x64x64xbf16> to vector<64x64xbf16>
    %cst_24 = arith.constant dense<0.000000e+00> : vector<8x64xf32>
    %27 = tpu.matmul %17, %26, %cst_24 {dimension_numbers = #tpu.dot_dimension_numbers<[1], [0], [0], [1], [0, 0, 1, 1], [], []>} : vector<8x64xbf16>, vector<64x64xbf16>, vector<8x64xf32> -> vector<8x64xf32>
    %28 = arith.truncf %27 : vector<8x64xf32> to vector<8x64xbf16>
    %c1_25 = arith.constant 1 : index
    %c0_26 = arith.constant 0 : index
    %c0_27 = arith.constant 0 : index
    %29 = vector.load %arg4[%c1_25, %c0_26, %c0_27] : memref<9x8x8xbf16, #tpu.memory_space<vmem>>, vector<1x8x8xbf16>
    %30 = vector.shape_cast %29 : vector<1x8x8xbf16> to vector<8x8xbf16>
    %cst_28 = arith.constant dense<0.000000e+00> : vector<8x64xf32>
    %31 = tpu.matmul %30, %28, %cst_28 {dimension_numbers = #tpu.dot_dimension_numbers<[1], [0], [0], [1], [0, 0, 1, 1], [], []>} : vector<8x8xbf16>, vector<8x64xbf16>, vector<8x64xf32> -> vector<8x64xf32>
    %32 = arith.addf %24, %31 : vector<8x64xf32>
    %c2_29 = arith.constant 2 : index
    %c0_30 = arith.constant 0 : index
    %c0_31 = arith.constant 0 : index
    %33 = vector.load %arg3[%c2_29, %c0_30, %c0_31] : memref<9x64x64xbf16, #tpu.memory_space<vmem>>, vector<1x64x64xbf16>
    %34 = vector.shape_cast %33 : vector<1x64x64xbf16> to vector<64x64xbf16>
    %cst_32 = arith.constant dense<0.000000e+00> : vector<8x64xf32>
    %35 = tpu.matmul %17, %34, %cst_32 {dimension_numbers = #tpu.dot_dimension_numbers<[1], [0], [0], [1], [0, 0, 1, 1], [], []>} : vector<8x64xbf16>, vector<64x64xbf16>, vector<8x64xf32> -> vector<8x64xf32>
    %36 = arith.truncf %35 : vector<8x64xf32> to vector<8x64xbf16>
    %c2_33 = arith.constant 2 : index
    %c0_34 = arith.constant 0 : index
    %c0_35 = arith.constant 0 : index
    %37 = vector.load %arg4[%c2_33, %c0_34, %c0_35] : memref<9x8x8xbf16, #tpu.memory_space<vmem>>, vector<1x8x8xbf16>
    %38 = vector.shape_cast %37 : vector<1x8x8xbf16> to vector<8x8xbf16>
    %cst_36 = arith.constant dense<0.000000e+00> : vector<8x64xf32>
    %39 = tpu.matmul %38, %36, %cst_36 {dimension_numbers = #tpu.dot_dimension_numbers<[1], [0], [0], [1], [0, 0, 1, 1], [], []>} : vector<8x8xbf16>, vector<8x64xbf16>, vector<8x64xf32> -> vector<8x64xf32>
    %40 = arith.addf %32, %39 : vector<8x64xf32>
    %c3_37 = arith.constant 3 : index
    %c0_38 = arith.constant 0 : index
    %c0_39 = arith.constant 0 : index
    %41 = vector.load %arg3[%c3_37, %c0_38, %c0_39] : memref<9x64x64xbf16, #tpu.memory_space<vmem>>, vector<1x64x64xbf16>
    %42 = vector.shape_cast %41 : vector<1x64x64xbf16> to vector<64x64xbf16>
    %cst_40 = arith.constant dense<0.000000e+00> : vector<8x64xf32>
    %43 = tpu.matmul %17, %42, %cst_40 {dimension_numbers = #tpu.dot_dimension_numbers<[1], [0], [0], [1], [0, 0, 1, 1], [], []>} : vector<8x64xbf16>, vector<64x64xbf16>, vector<8x64xf32> -> vector<8x64xf32>
    %44 = arith.truncf %43 : vector<8x64xf32> to vector<8x64xbf16>
    %c3_41 = arith.constant 3 : index
    %c0_42 = arith.constant 0 : index
    %c0_43 = arith.constant 0 : index
    %45 = vector.load %arg4[%c3_41, %c0_42, %c0_43] : memref<9x8x8xbf16, #tpu.memory_space<vmem>>, vector<1x8x8xbf16>
    %46 = vector.shape_cast %45 : vector<1x8x8xbf16> to vector<8x8xbf16>
    %cst_44 = arith.constant dense<0.000000e+00> : vector<8x64xf32>
    %47 = tpu.matmul %46, %44, %cst_44 {dimension_numbers = #tpu.dot_dimension_numbers<[1], [0], [0], [1], [0, 0, 1, 1], [], []>} : vector<8x8xbf16>, vector<8x64xbf16>, vector<8x64xf32> -> vector<8x64xf32>
    %48 = arith.addf %40, %47 : vector<8x64xf32>
    %c4 = arith.constant 4 : index
    %c0_45 = arith.constant 0 : index
    %c0_46 = arith.constant 0 : index
    %49 = vector.load %arg3[%c4, %c0_45, %c0_46] : memref<9x64x64xbf16, #tpu.memory_space<vmem>>, vector<1x64x64xbf16>
    %50 = vector.shape_cast %49 : vector<1x64x64xbf16> to vector<64x64xbf16>
    %cst_47 = arith.constant dense<0.000000e+00> : vector<8x64xf32>
    %51 = tpu.matmul %17, %50, %cst_47 {dimension_numbers = #tpu.dot_dimension_numbers<[1], [0], [0], [1], [0, 0, 1, 1], [], []>} : vector<8x64xbf16>, vector<64x64xbf16>, vector<8x64xf32> -> vector<8x64xf32>
    %52 = arith.truncf %51 : vector<8x64xf32> to vector<8x64xbf16>
    %c4_48 = arith.constant 4 : index
    %c0_49 = arith.constant 0 : index
    %c0_50 = arith.constant 0 : index
    %53 = vector.load %arg4[%c4_48, %c0_49, %c0_50] : memref<9x8x8xbf16, #tpu.memory_space<vmem>>, vector<1x8x8xbf16>
    %54 = vector.shape_cast %53 : vector<1x8x8xbf16> to vector<8x8xbf16>
    %cst_51 = arith.constant dense<0.000000e+00> : vector<8x64xf32>
    %55 = tpu.matmul %54, %52, %cst_51 {dimension_numbers = #tpu.dot_dimension_numbers<[1], [0], [0], [1], [0, 0, 1, 1], [], []>} : vector<8x8xbf16>, vector<8x64xbf16>, vector<8x64xf32> -> vector<8x64xf32>
    %56 = arith.addf %48, %55 : vector<8x64xf32>
    %c5 = arith.constant 5 : index
    %c0_52 = arith.constant 0 : index
    %c0_53 = arith.constant 0 : index
    %57 = vector.load %arg3[%c5, %c0_52, %c0_53] : memref<9x64x64xbf16, #tpu.memory_space<vmem>>, vector<1x64x64xbf16>
    %58 = vector.shape_cast %57 : vector<1x64x64xbf16> to vector<64x64xbf16>
    %cst_54 = arith.constant dense<0.000000e+00> : vector<8x64xf32>
    %59 = tpu.matmul %17, %58, %cst_54 {dimension_numbers = #tpu.dot_dimension_numbers<[1], [0], [0], [1], [0, 0, 1, 1], [], []>} : vector<8x64xbf16>, vector<64x64xbf16>, vector<8x64xf32> -> vector<8x64xf32>
    %60 = arith.truncf %59 : vector<8x64xf32> to vector<8x64xbf16>
    %c5_55 = arith.constant 5 : index
    %c0_56 = arith.constant 0 : index
    %c0_57 = arith.constant 0 : index
    %61 = vector.load %arg4[%c5_55, %c0_56, %c0_57] : memref<9x8x8xbf16, #tpu.memory_space<vmem>>, vector<1x8x8xbf16>
    %62 = vector.shape_cast %61 : vector<1x8x8xbf16> to vector<8x8xbf16>
    %cst_58 = arith.constant dense<0.000000e+00> : vector<8x64xf32>
    %63 = tpu.matmul %62, %60, %cst_58 {dimension_numbers = #tpu.dot_dimension_numbers<[1], [0], [0], [1], [0, 0, 1, 1], [], []>} : vector<8x8xbf16>, vector<8x64xbf16>, vector<8x64xf32> -> vector<8x64xf32>
    %64 = arith.addf %56, %63 : vector<8x64xf32>
    %c6 = arith.constant 6 : index
    %c0_59 = arith.constant 0 : index
    %c0_60 = arith.constant 0 : index
    %65 = vector.load %arg3[%c6, %c0_59, %c0_60] : memref<9x64x64xbf16, #tpu.memory_space<vmem>>, vector<1x64x64xbf16>
    %66 = vector.shape_cast %65 : vector<1x64x64xbf16> to vector<64x64xbf16>
    %cst_61 = arith.constant dense<0.000000e+00> : vector<8x64xf32>
    %67 = tpu.matmul %17, %66, %cst_61 {dimension_numbers = #tpu.dot_dimension_numbers<[1], [0], [0], [1], [0, 0, 1, 1], [], []>} : vector<8x64xbf16>, vector<64x64xbf16>, vector<8x64xf32> -> vector<8x64xf32>
    %68 = arith.truncf %67 : vector<8x64xf32> to vector<8x64xbf16>
    %c6_62 = arith.constant 6 : index
    %c0_63 = arith.constant 0 : index
    %c0_64 = arith.constant 0 : index
    %69 = vector.load %arg4[%c6_62, %c0_63, %c0_64] : memref<9x8x8xbf16, #tpu.memory_space<vmem>>, vector<1x8x8xbf16>
    %70 = vector.shape_cast %69 : vector<1x8x8xbf16> to vector<8x8xbf16>
    %cst_65 = arith.constant dense<0.000000e+00> : vector<8x64xf32>
    %71 = tpu.matmul %70, %68, %cst_65 {dimension_numbers = #tpu.dot_dimension_numbers<[1], [0], [0], [1], [0, 0, 1, 1], [], []>} : vector<8x8xbf16>, vector<8x64xbf16>, vector<8x64xf32> -> vector<8x64xf32>
    %72 = arith.addf %64, %71 : vector<8x64xf32>
    %c7 = arith.constant 7 : index
    %c0_66 = arith.constant 0 : index
    %c0_67 = arith.constant 0 : index
    %73 = vector.load %arg3[%c7, %c0_66, %c0_67] : memref<9x64x64xbf16, #tpu.memory_space<vmem>>, vector<1x64x64xbf16>
    %74 = vector.shape_cast %73 : vector<1x64x64xbf16> to vector<64x64xbf16>
    %cst_68 = arith.constant dense<0.000000e+00> : vector<8x64xf32>
    %75 = tpu.matmul %17, %74, %cst_68 {dimension_numbers = #tpu.dot_dimension_numbers<[1], [0], [0], [1], [0, 0, 1, 1], [], []>} : vector<8x64xbf16>, vector<64x64xbf16>, vector<8x64xf32> -> vector<8x64xf32>
    %76 = arith.truncf %75 : vector<8x64xf32> to vector<8x64xbf16>
    %c7_69 = arith.constant 7 : index
    %c0_70 = arith.constant 0 : index
    %c0_71 = arith.constant 0 : index
    %77 = vector.load %arg4[%c7_69, %c0_70, %c0_71] : memref<9x8x8xbf16, #tpu.memory_space<vmem>>, vector<1x8x8xbf16>
    %78 = vector.shape_cast %77 : vector<1x8x8xbf16> to vector<8x8xbf16>
    %cst_72 = arith.constant dense<0.000000e+00> : vector<8x64xf32>
    %79 = tpu.matmul %78, %76, %cst_72 {dimension_numbers = #tpu.dot_dimension_numbers<[1], [0], [0], [1], [0, 0, 1, 1], [], []>} : vector<8x8xbf16>, vector<8x64xbf16>, vector<8x64xf32> -> vector<8x64xf32>
    %80 = arith.addf %72, %79 : vector<8x64xf32>
    %c8 = arith.constant 8 : index
    %c0_73 = arith.constant 0 : index
    %c0_74 = arith.constant 0 : index
    %81 = vector.load %arg3[%c8, %c0_73, %c0_74] : memref<9x64x64xbf16, #tpu.memory_space<vmem>>, vector<1x64x64xbf16>
    %82 = vector.shape_cast %81 : vector<1x64x64xbf16> to vector<64x64xbf16>
    %cst_75 = arith.constant dense<0.000000e+00> : vector<8x64xf32>
    %83 = tpu.matmul %17, %82, %cst_75 {dimension_numbers = #tpu.dot_dimension_numbers<[1], [0], [0], [1], [0, 0, 1, 1], [], []>} : vector<8x64xbf16>, vector<64x64xbf16>, vector<8x64xf32> -> vector<8x64xf32>
    %84 = arith.truncf %83 : vector<8x64xf32> to vector<8x64xbf16>
    %c8_76 = arith.constant 8 : index
    %c0_77 = arith.constant 0 : index
    %c0_78 = arith.constant 0 : index
    %85 = vector.load %arg4[%c8_76, %c0_77, %c0_78] : memref<9x8x8xbf16, #tpu.memory_space<vmem>>, vector<1x8x8xbf16>
    %86 = vector.shape_cast %85 : vector<1x8x8xbf16> to vector<8x8xbf16>
    %cst_79 = arith.constant dense<0.000000e+00> : vector<8x64xf32>
    %87 = tpu.matmul %86, %84, %cst_79 {dimension_numbers = #tpu.dot_dimension_numbers<[1], [0], [0], [1], [0, 0, 1, 1], [], []>} : vector<8x8xbf16>, vector<8x64xbf16>, vector<8x64xf32> -> vector<8x64xf32>
    %88 = arith.addf %80, %87 : vector<8x64xf32>
    %c0_80 = arith.constant 0 : index
    %c0_81 = arith.constant 0 : index
    %89 = vector.load %arg5[%c0_80, %c0_81] : memref<8x1xf32, #tpu.memory_space<vmem>>, vector<8x1xf32>
    %90 = vector.broadcast %89 : vector<8x1xf32> to vector<8x64xf32>
    %91 = arith.addf %88, %90 : vector<8x64xf32>
    %92 = arith.truncf %91 : vector<8x64xf32> to vector<8x64xbf16>
    %c0_82 = arith.constant 0 : index
    %c0_83 = arith.constant 0 : index
    %93 = vector.load %arg6[%c0_82, %c0_83] : memref<64x256xbf16, #tpu.memory_space<vmem>>, vector<64x256xbf16>
    %cst_84 = arith.constant dense<0.000000e+00> : vector<8x256xf32>
    %94 = tpu.matmul %92, %93, %cst_84 {dimension_numbers = #tpu.dot_dimension_numbers<[1], [0], [0], [1], [0, 0, 1, 1], [], []>} : vector<8x64xbf16>, vector<64x256xbf16>, vector<8x256xf32> -> vector<8x256xf32>
    %95 = arith.negf %94 : vector<8x256xf32>
    %96 = math.exp %95 : vector<8x256xf32>
    %cst_85 = arith.constant 1.000000e+00 : f32
    %97 = vector.broadcast %cst_85 : f32 to vector<8x256xf32>
    %98 = arith.addf %97, %96 : vector<8x256xf32>
    %99 = arith.divf %97, %98 : vector<8x256xf32>
    %100 = arith.mulf %0, %99 : vector<8x256xf32>
    %c0_86 = arith.constant 0 : index
    %c0_87 = arith.constant 0 : index
    %101 = vector.load %arg7[%c0_86, %c0_87] : memref<8x256xf32, #tpu.memory_space<vmem>>, vector<8x256xf32>
    tpu.vector_store %arg7[%c0_86, %c0_87], %100 {strides = array<i32>} : memref<8x256xf32, #tpu.memory_space<vmem>>, vector<8x256xf32>,
    return
  }
  func.func @transform_0(%arg0: i32) -> (i32, i32) {
    %c0_i32 = arith.constant 0 : i32
    %c0_i32_0 = arith.constant 0 : i32
    return %arg0, %c0_i32 : i32, i32
  }
  func.func @transform_1(%arg0: i32) -> (i32, i32, i32) {
    %c0_i32 = arith.constant 0 : i32
    %c0_i32_0 = arith.constant 0 : i32
    %c0_i32_1 = arith.constant 0 : i32
    %c0_i32_2 = arith.constant 0 : i32
    return %c0_i32, %c0_i32_0, %c0_i32_1 : i32, i32, i32
  }
  func.func @transform_2(%arg0: i32) -> (i32, i32, i32) {
    %c0_i32 = arith.constant 0 : i32
    %c0_i32_0 = arith.constant 0 : i32
    %c0_i32_1 = arith.constant 0 : i32
    %c0_i32_2 = arith.constant 0 : i32
    return %c0_i32, %c0_i32_0, %c0_i32_1 : i32, i32, i32
  }
  func.func @transform_3(%arg0: i32) -> (i32, i32, i32) {
    %c0_i32 = arith.constant 0 : i32
    %c0_i32_0 = arith.constant 0 : i32
    %c0_i32_1 = arith.constant 0 : i32
    %c0_i32_2 = arith.constant 0 : i32
    return %c0_i32, %c0_i32_0, %c0_i32_1 : i32, i32, i32
  }
  func.func @transform_4(%arg0: i32) -> (i32, i32) {
    %c0_i32 = arith.constant 0 : i32
    %c0_i32_0 = arith.constant 0 : i32
    %c0_i32_1 = arith.constant 0 : i32
    return %c0_i32, %c0_i32_0 : i32, i32
  }
  func.func @transform_5(%arg0: i32) -> (i32, i32) {
    %c0_i32 = arith.constant 0 : i32
    %c0_i32_0 = arith.constant 0 : i32
    %c0_i32_1 = arith.constant 0 : i32
    return %c0_i32, %c0_i32_0 : i32, i32
  }
  func.func @transform_6(%arg0: i32) -> (i32, i32) {
    %c0_i32 = arith.constant 0 : i32
    %c0_i32_0 = arith.constant 0 : i32
    return %arg0, %c0_i32 : i32, i32
  }
}

</mosaic_0001>

<llo_original>
// kernel: tpu_custom_call.1
$region0: #{tpu_custom_call.1}
  #allocation0 [shape = 'u32[]', space=smem, size = 0x4, offset = 0x4, fixed_abs, tag = 'smem constant byte address 0x4 - core index']
  #allocation1 [shape = 'u32[72,128]{1,0:T(1,128)}', space=vmem, size = 0x9000, scoped, tag = 'internal scratch']
  %s0 = inlined_call_operand.vmem [shape: f32[8,256], index: 0, kind: input, shape index: {}]
  %s1 = inlined_call_operand.vmem [shape: bf16[4,256,64], index: 1, kind: input, shape index: {}]
  %s2 = inlined_call_operand.vmem [shape: bf16[9,64,64], index: 2, kind: input, shape index: {}]
  %s3 = inlined_call_operand.vmem [shape: bf16[9,8,8], index: 3, kind: input, shape index: {}]
  %s4 = inlined_call_operand.vmem [shape: f32[8,1], index: 4, kind: input, shape index: {}]
  %s5 = inlined_call_operand.vmem [shape: bf16[64,256], index: 5, kind: input, shape index: {}]
  %s6 = inlined_call_operand.hbm [shape: f32[8,256], index: 6, kind: output, shape index: {}]
  %s7 = sld [smem:[#allocation0]]
  $region34: #{tpu_custom_call.1} parent=0
    _
  %s9 = ssub.s32 1, %s7
  %s10 = scalar_select 0, %s9, %s7
  $region1: #{tpu_custom_call.1} parent=0
    #allocation2 [shape = 'u8[8192]{0}', space=vmem, size = 0x2000, scoped, tag = 'output window, operand 0, single buffered']
    #allocation3 [shape = 's32[1]{0}', space=sflag, size = 0x4, scoped, tag = 'scoped memory for tpu_custom_call.1']
    %11 = vsyncpa [#allocation3], 0
    // Predicated region
    $region2: #{tpu_custom_call.1} parent=1 // pred_check
      _
    $region3: #{tpu_custom_call.1} parent=1 // pred_check_branch
      %13 = sbr.rel (0) target = $region5
    $region4: #{tpu_custom_call.1} parent=1 // pred_region
      _
    $region5: #{tpu_custom_call.1} parent=1 // pred_fallthru
      _
    // Predicated region
    $region6: #{tpu_custom_call.1} parent=1 // pred_check
      _
    $region7: #{tpu_custom_call.1} parent=1 // pred_check_branch
      %15 = sbr.rel (0) target = $region9
    $region8: #{tpu_custom_call.1} parent=1 // pred_region
      _
    $region9: #{tpu_custom_call.1} parent=1 // pred_fallthru
      _
    // Predicated region
    $region10: #{tpu_custom_call.1} parent=1 // pred_check
      _
    $region11: #{tpu_custom_call.1} parent=1 // pred_check_branch
      %17 = sbr.rel (0) target = $region13
    $region12: #{tpu_custom_call.1} parent=1 // pred_region
      _
    $region13: #{tpu_custom_call.1} parent=1 // pred_fallthru
      _
    // Predicated region
    $region14: #{tpu_custom_call.1} parent=1 // pred_check
      _
    $region15: #{tpu_custom_call.1} parent=1 // pred_check_branch
      %19 = sbr.rel (0) target = $region17
    $region16: #{tpu_custom_call.1} parent=1 // pred_region
      _
    $region17: #{tpu_custom_call.1} parent=1 // pred_fallthru
      _
    // Predicated region
    $region18: #{tpu_custom_call.1} parent=1 // pred_check
      _
    $region19: #{tpu_custom_call.1} parent=1 // pred_check_branch
      %21 = sbr.rel (0) target = $region21
    $region20: #{tpu_custom_call.1} parent=1 // pred_region
      _
    $region21: #{tpu_custom_call.1} parent=1 // pred_fallthru
      _
    // Predicated region
    $region22: #{tpu_custom_call.1} parent=1 // pred_check
      _
    $region23: #{tpu_custom_call.1} parent=1 // pred_check_branch
      %23 = sbr.rel (0) target = $region25
    $region24: #{tpu_custom_call.1} parent=1 // pred_region
      _
    $region25: #{tpu_custom_call.1} parent=1 // pred_fallthru
      _
    %v25 = vld [vmem:[%s0] sm:$0xff]
    %v26 = vld [vmem:[%s0 + $0x8] sm:$0xff]
    %v27 = vpack.c.bf16 %v25, %v25
    %v28 = vpack.c.bf16 %v26, %v26
    %v29 = vld [vmem:[%s1] sm:$0xf]
    %v30 = vld [vmem:[%s1 + $0x4] sm:$0xf]
    %v31 = vld [vmem:[%s1 + $0x8] sm:$0xf]
    %v32 = vld [vmem:[%s1 + $0xc] sm:$0xf]
    %v33 = vld [vmem:[%s1 + $0x10] sm:$0xf]
    %v34 = vld [vmem:[%s1 + $0x14] sm:$0xf]
    %v35 = vld [vmem:[%s1 + $0x18] sm:$0xf]
    %v36 = vld [vmem:[%s1 + $0x1c] sm:$0xf]
    %v37 = vld [vmem:[%s1 + $0x20] sm:$0xf]
    %v38 = vld [vmem:[%s1 + $0x24] sm:$0xf]
    %v39 = vld [vmem:[%s1 + $0x28] sm:$0xf]
    %v40 = vld [vmem:[%s1 + $0x2c] sm:$0xf]
    %v41 = vld [vmem:[%s1 + $0x30] sm:$0xf]
    %v42 = vld [vmem:[%s1 + $0x34] sm:$0xf]
    %v43 = vld [vmem:[%s1 + $0x38] sm:$0xf]
    %v44 = vld [vmem:[%s1 + $0x3c] sm:$0xf]
    %v45 = vld [vmem:[%s1 + $0x40] sm:$0xf]
    %v46 = vld [vmem:[%s1 + $0x44] sm:$0xf]
    %v47 = vld [vmem:[%s1 + $0x48] sm:$0xf]
    %v48 = vld [vmem:[%s1 + $0x4c] sm:$0xf]
    %v49 = vld [vmem:[%s1 + $0x50] sm:$0xf]
    %v50 = vld [vmem:[%s1 + $0x54] sm:$0xf]
    %v51 = vld [vmem:[%s1 + $0x58] sm:$0xf]
    %v52 = vld [vmem:[%s1 + $0x5c] sm:$0xf]
    %v53 = vld [vmem:[%s1 + $0x60] sm:$0xf]
    %v54 = vld [vmem:[%s1 + $0x64] sm:$0xf]
    %v55 = vld [vmem:[%s1 + $0x68] sm:$0xf]
    %v56 = vld [vmem:[%s1 + $0x6c] sm:$0xf]
    %v57 = vld [vmem:[%s1 + $0x70] sm:$0xf]
    %v58 = vld [vmem:[%s1 + $0x74] sm:$0xf]
    %v59 = vld [vmem:[%s1 + $0x78] sm:$0xf]
    %v60 = vld [vmem:[%s1 + $0x7c] sm:$0xf]
    %v93 = vunpack.c.l.b16 %v29
    %v94 = vunpack.c.l.b16 %v30
    %v95 = vunpack.c.l.b16 %v31
    %v96 = vunpack.c.l.b16 %v32
    %v97 = vunpack.c.l.b16 %v33
    %v98 = vunpack.c.l.b16 %v34
    %v99 = vunpack.c.l.b16 %v35
    %v100 = vunpack.c.l.b16 %v36
    %v101 = vunpack.c.l.b16 %v37
    %v102 = vunpack.c.l.b16 %v38
    %v103 = vunpack.c.l.b16 %v39
    %v104 = vunpack.c.l.b16 %v40
    %v105 = vunpack.c.l.b16 %v41
    %v106 = vunpack.c.l.b16 %v42
    %v107 = vunpack.c.l.b16 %v43
    %v108 = vunpack.c.l.b16 %v44
    %v109 = vunpack.c.l.b16 %v45
    %v110 = vunpack.c.l.b16 %v46
    %v111 = vunpack.c.l.b16 %v47
    %v112 = vunpack.c.l.b16 %v48
    %v113 = vunpack.c.l.b16 %v49
    %v114 = vunpack.c.l.b16 %v50
    %v115 = vunpack.c.l.b16 %v51
    %v116 = vunpack.c.l.b16 %v52
    %v117 = vunpack.c.l.b16 %v53
    %v118 = vunpack.c.l.b16 %v54
    %v119 = vunpack.c.l.b16 %v55
    %v120 = vunpack.c.l.b16 %v56
    %v121 = vunpack.c.l.b16 %v57
    %v122 = vunpack.c.l.b16 %v58
    %v123 = vunpack.c.l.b16 %v59
    %v124 = vunpack.c.l.b16 %v60
    %v125 = vpack.c.b16 %v94, %v93
    %v126 = vpack.c.b16 %v96, %v95
    %v127 = vpack.c.b16 %v98, %v97
    %v128 = vpack.c.b16 %v100, %v99
    %v129 = vpack.c.b16 %v102, %v101
    %v130 = vpack.c.b16 %v104, %v103
    %v131 = vpack.c.b16 %v106, %v105
    %v132 = vpack.c.b16 %v108, %v107
    %v133 = vpack.c.b16 %v110, %v109
    %v134 = vpack.c.b16 %v112, %v111
    %v135 = vpack.c.b16 %v114, %v113
    %v136 = vpack.c.b16 %v116, %v115
    %v137 = vpack.c.b16 %v118, %v117
    %v138 = vpack.c.b16 %v120, %v119
    %v139 = vpack.c.b16 %v122, %v121
    %v140 = vpack.c.b16 %v124, %v123
    %157 = vmatpush.bf16.msra.mxu0 %v132
    %158 = vmatpush.bf16.msra.mxu0 %v131
    %159 = vmatpush.bf16.msra.mxu0 %v130
    %160 = vmatpush.bf16.msra.mxu0 %v129
    %161 = vmatpush.bf16.msra.mxu0 %v128
    %162 = vmatpush.bf16.msra.mxu0 %v127
    %163 = vmatpush.bf16.msra.mxu0 %v126
    %164 = vmatpush.bf16.msra.mxu0 %v125
    %165 = vmatmul.bf16.gmra.mxu0 %v27
    %v166 = vpop.f32.mrf.mxu0
    %v167 = vadd.f32 0.0, %v166
    %v168 = vpop.f32.mrf.mxu0
    %169 = vdwg.mxu0
    %170 = vmatpush.bf16.msra.mxu0 %v140
    %171 = vmatpush.bf16.msra.mxu0 %v139
    %172 = vmatpush.bf16.msra.mxu0 %v138
    %173 = vmatpush.bf16.msra.mxu0 %v137
    %174 = vmatpush.bf16.msra.mxu0 %v136
    %175 = vmatpush.bf16.msra.mxu0 %v135
    %176 = vmatpush.bf16.msra.mxu0 %v134
    %177 = vmatpush.bf16.msra.mxu0 %v133
    %178 = vmatmul.bf16.gmra.mxu0 %v28
    %v179 = vpop.f32.mrf.mxu0
    %v180 = vadd.f32 %v167, %v179
    %v181 = vpop.f32.mrf.mxu0
    %182 = vdwg.mxu0
    %s183 = scalar_lea.vmem %s1, 128
    %v184 = vld [vmem:[%s183] sm:$0xf]
    %v185 = vld [vmem:[%s183 + $0x4] sm:$0xf]
    %v186 = vld [vmem:[%s183 + $0x8] sm:$0xf]
    %v187 = vld [vmem:[%s183 + $0xc] sm:$0xf]
    %v188 = vld [vmem:[%s183 + $0x10] sm:$0xf]
    %v189 = vld [vmem:[%s183 + $0x14] sm:$0xf]
    %v190 = vld [vmem:[%s183 + $0x18] sm:$0xf]
    %v191 = vld [vmem:[%s183 + $0x1c] sm:$0xf]
    %v192 = vld [vmem:[%s183 + $0x20] sm:$0xf]
    %v193 = vld [vmem:[%s183 + $0x24] sm:$0xf]
    %v194 = vld [vmem:[%s183 + $0x28] sm:$0xf]
    %v195 = vld [vmem:[%s183 + $0x2c] sm:$0xf]
    %v196 = vld [vmem:[%s183 + $0x30] sm:$0xf]
    %v197 = vld [vmem:[%s183 + $0x34] sm:$0xf]
    %v198 = vld [vmem:[%s183 + $0x38] sm:$0xf]
    %v199 = vld [vmem:[%s183 + $0x3c] sm:$0xf]
    %v200 = vld [vmem:[%s183 + $0x40] sm:$0xf]
    %v201 = vld [vmem:[%s183 + $0x44] sm:$0xf]
    %v202 = vld [vmem:[%s183 + $0x48] sm:$0xf]
    %v203 = vld [vmem:[%s183 + $0x4c] sm:$0xf]
    %v204 = vld [vmem:[%s183 + $0x50] sm:$0xf]
    %v205 = vld [vmem:[%s183 + $0x54] sm:$0xf]
    %v206 = vld [vmem:[%s183 + $0x58] sm:$0xf]
    %v207 = vld [vmem:[%s183 + $0x5c] sm:$0xf]
    %v208 = vld [vmem:[%s183 + $0x60] sm:$0xf]
    %v209 = vld [vmem:[%s183 + $0x64] sm:$0xf]
    %v210 = vld [vmem:[%s183 + $0x68] sm:$0xf]
    %v211 = vld [vmem:[%s183 + $0x6c] sm:$0xf]
    %v212 = vld [vmem:[%s183 + $0x70] sm:$0xf]
    %v213 = vld [vmem:[%s183 + $0x74] sm:$0xf]
    %v214 = vld [vmem:[%s183 + $0x78] sm:$0xf]
    %v215 = vld [vmem:[%s183 + $0x7c] sm:$0xf]
    %v248 = vunpack.c.l.b16 %v184
    %v249 = vunpack.c.l.b16 %v185
    %v250 = vunpack.c.l.b16 %v186
    %v251 = vunpack.c.l.b16 %v187
    %v252 = vunpack.c.l.b16 %v188
    %v253 = vunpack.c.l.b16 %v189
    %v254 = vunpack.c.l.b16 %v190
    %v255 = vunpack.c.l.b16 %v191
    %v256 = vunpack.c.l.b16 %v192
    %v257 = vunpack.c.l.b16 %v193
    %v258 = vunpack.c.l.b16 %v194
    %v259 = vunpack.c.l.b16 %v195
    %v260 = vunpack.c.l.b16 %v196
    %v261 = vunpack.c.l.b16 %v197
    %v262 = vunpack.c.l.b16 %v198
    %v263 = vunpack.c.l.b16 %v199
    %v264 = vunpack.c.l.b16 %v200
    %v265 = vunpack.c.l.b16 %v201
    %v266 = vunpack.c.l.b16 %v202
    %v267 = vunpack.c.l.b16 %v203
    %v268 = vunpack.c.l.b16 %v204
    %v269 = vunpack.c.l.b16 %v205
    %v270 = vunpack.c.l.b16 %v206
    %v271 = vunpack.c.l.b16 %v207
    %v272 = vunpack.c.l.b16 %v208
    %v273 = vunpack.c.l.b16 %v209
    %v274 = vunpack.c.l.b16 %v210
    %v275 = vunpack.c.l.b16 %v211
    %v276 = vunpack.c.l.b16 %v212
    %v277 = vunpack.c.l.b16 %v213
    %v278 = vunpack.c.l.b16 %v214
    %v279 = vunpack.c.l.b16 %v215
    %v280 = vpack.c.b16 %v249, %v248
    %v281 = vpack.c.b16 %v251, %v250
    %v282 = vpack.c.b16 %v253, %v252
    %v283 = vpack.c.b16 %v255, %v254
    %v284 = vpack.c.b16 %v257, %v256
    %v285 = vpack.c.b16 %v259, %v258
    %v286 = vpack.c.b16 %v261, %v260
    %v287 = vpack.c.b16 %v263, %v262
    %v288 = vpack.c.b16 %v265, %v264
    %v289 = vpack.c.b16 %v267, %v266
    %v290 = vpack.c.b16 %v269, %v268
    %v291 = vpack.c.b16 %v271, %v270
    %v292 = vpack.c.b16 %v273, %v272
    %v293 = vpack.c.b16 %v275, %v274
    %v294 = vpack.c.b16 %v277, %v276
    %v295 = vpack.c.b16 %v279, %v278
    %312 = vmatpush.bf16.msra.mxu0 %v287
    %313 = vmatpush.bf16.msra.mxu0 %v286
    %314 = vmatpush.bf16.msra.mxu0 %v285
    %315 = vmatpush.bf16.msra.mxu0 %v284
    %316 = vmatpush.bf16.msra.mxu0 %v283
    %317 = vmatpush.bf16.msra.mxu0 %v282
    %318 = vmatpush.bf16.msra.mxu0 %v281
    %319 = vmatpush.bf16.msra.mxu0 %v280
    %320 = vmatmul.bf16.gmra.mxu0 %v27
    %v321 = vpop.f32.mrf.mxu0
    %v322 = vadd.f32 0.0, %v321
    %v323 = vpop.f32.mrf.mxu0
    %324 = vdwg.mxu0
    %325 = vmatpush.bf16.msra.mxu0 %v295
    %326 = vmatpush.bf16.msra.mxu0 %v294
    %327 = vmatpush.bf16.msra.mxu0 %v293
    %328 = vmatpush.bf16.msra.mxu0 %v292
    %329 = vmatpush.bf16.msra.mxu0 %v291
    %330 = vmatpush.bf16.msra.mxu0 %v290
    %331 = vmatpush.bf16.msra.mxu0 %v289
    %332 = vmatpush.bf16.msra.mxu0 %v288
    %333 = vmatmul.bf16.gmra.mxu0 %v28
    %v334 = vpop.f32.mrf.mxu0
    %v335 = vadd.f32 %v322, %v334
    %v336 = vpop.f32.mrf.mxu0
    %337 = vdwg.mxu0
    %v338 = vmax.f32 %v180, %v335
    %s339 = scalar_lea.vmem %s1, 256
    %v340 = vld [vmem:[%s339] sm:$0xf]
    %v341 = vld [vmem:[%s339 + $0x4] sm:$0xf]
    %v342 = vld [vmem:[%s339 + $0x8] sm:$0xf]
    %v343 = vld [vmem:[%s339 + $0xc] sm:$0xf]
    %v344 = vld [vmem:[%s339 + $0x10] sm:$0xf]
    %v345 = vld [vmem:[%s339 + $0x14] sm:$0xf]
    %v346 = vld [vmem:[%s339 + $0x18] sm:$0xf]
    %v347 = vld [vmem:[%s339 + $0x1c] sm:$0xf]
    %v348 = vld [vmem:[%s339 + $0x20] sm:$0xf]
    %v349 = vld [vmem:[%s339 + $0x24] sm:$0xf]
    %v350 = vld [vmem:[%s339 + $0x28] sm:$0xf]
    %v351 = vld [vmem:[%s339 + $0x2c] sm:$0xf]
    %v352 = vld [vmem:[%s339 + $0x30] sm:$0xf]
    %v353 = vld [vmem:[%s339 + $0x34] sm:$0xf]
    %v354 = vld [vmem:[%s339 + $0x38] sm:$0xf]
    %v355 = vld [vmem:[%s339 + $0x3c] sm:$0xf]
    %v356 = vld [vmem:[%s339 + $0x40] sm:$0xf]
    %v357 = vld [vmem:[%s339 + $0x44] sm:$0xf]
    %v358 = vld [vmem:[%s339 + $0x48] sm:$0xf]
    %v359 = vld [vmem:[%s339 + $0x4c] sm:$0xf]
    %v360 = vld [vmem:[%s339 + $0x50] sm:$0xf]
    %v361 = vld [vmem:[%s339 + $0x54] sm:$0xf]
    %v362 = vld [vmem:[%s339 + $0x58] sm:$0xf]
    %v363 = vld [vmem:[%s339 + $0x5c] sm:$0xf]
    %v364 = vld [vmem:[%s339 + $0x60] sm:$0xf]
    %v365 = vld [vmem:[%s339 + $0x64] sm:$0xf]
    %v366 = vld [vmem:[%s339 + $0x68] sm:$0xf]
    %v367 = vld [vmem:[%s339 + $0x6c] sm:$0xf]
    %v368 = vld [vmem:[%s339 + $0x70] sm:$0xf]
    %v369 = vld [vmem:[%s339 + $0x74] sm:$0xf]
    %v370 = vld [vmem:[%s339 + $0x78] sm:$0xf]
    %v371 = vld [vmem:[%s339 + $0x7c] sm:$0xf]
    %v404 = vunpack.c.l.b16 %v340
    %v405 = vunpack.c.l.b16 %v341
    %v406 = vunpack.c.l.b16 %v342
    %v407 = vunpack.c.l.b16 %v343
    %v408 = vunpack.c.l.b16 %v344
    %v409 = vunpack.c.l.b16 %v345
    %v410 = vunpack.c.l.b16 %v346
    %v411 = vunpack.c.l.b16 %v347
    %v412 = vunpack.c.l.b16 %v348
    %v413 = vunpack.c.l.b16 %v349
    %v414 = vunpack.c.l.b16 %v350
    %v415 = vunpack.c.l.b16 %v351
    %v416 = vunpack.c.l.b16 %v352
    %v417 = vunpack.c.l.b16 %v353
    %v418 = vunpack.c.l.b16 %v354
    %v419 = vunpack.c.l.b16 %v355
    %v420 = vunpack.c.l.b16 %v356
    %v421 = vunpack.c.l.b16 %v357
    %v422 = vunpack.c.l.b16 %v358
    %v423 = vunpack.c.l.b16 %v359
    %v424 = vunpack.c.l.b16 %v360
    %v425 = vunpack.c.l.b16 %v361
    %v426 = vunpack.c.l.b16 %v362
    %v427 = vunpack.c.l.b16 %v363
    %v428 = vunpack.c.l.b16 %v364
    %v429 = vunpack.c.l.b16 %v365
    %v430 = vunpack.c.l.b16 %v366
    %v431 = vunpack.c.l.b16 %v367
    %v432 = vunpack.c.l.b16 %v368
    %v433 = vunpack.c.l.b16 %v369
    %v434 = vunpack.c.l.b16 %v370
    %v435 = vunpack.c.l.b16 %v371
    %v436 = vpack.c.b16 %v405, %v404
    %v437 = vpack.c.b16 %v407, %v406
    %v438 = vpack.c.b16 %v409, %v408
    %v439 = vpack.c.b16 %v411, %v410
    %v440 = vpack.c.b16 %v413, %v412
    %v441 = vpack.c.b16 %v415, %v414
    %v442 = vpack.c.b16 %v417, %v416
    %v443 = vpack.c.b16 %v419, %v418
    %v444 = vpack.c.b16 %v421, %v420
    %v445 = vpack.c.b16 %v423, %v422
    %v446 = vpack.c.b16 %v425, %v424
    %v447 = vpack.c.b16 %v427, %v426
    %v448 = vpack.c.b16 %v429, %v428
    %v449 = vpack.c.b16 %v431, %v430
    %v450 = vpack.c.b16 %v433, %v432
    %v451 = vpack.c.b16 %v435, %v434
    %468 = vmatpush.bf16.msra.mxu0 %v443
    %469 = vmatpush.bf16.msra.mxu0 %v442
    %470 = vmatpush.bf16.msra.mxu0 %v441
    %471 = vmatpush.bf16.msra.mxu0 %v440
    %472 = vmatpush.bf16.msra.mxu0 %v439
    %473 = vmatpush.bf16.msra.mxu0 %v438
    %474 = vmatpush.bf16.msra.mxu0 %v437
    %475 = vmatpush.bf16.msra.mxu0 %v436
    %476 = vmatmul.bf16.gmra.mxu0 %v27
    %v477 = vpop.f32.mrf.mxu0
    %v478 = vadd.f32 0.0, %v477
    %v479 = vpop.f32.mrf.mxu0
    %480 = vdwg.mxu0
    %481 = vmatpush.bf16.msra.mxu0 %v451
    %482 = vmatpush.bf16.msra.mxu0 %v450
    %483 = vmatpush.bf16.msra.mxu0 %v449
    %484 = vmatpush.bf16.msra.mxu0 %v448
    %485 = vmatpush.bf16.msra.mxu0 %v447
    %486 = vmatpush.bf16.msra.mxu0 %v446
    %487 = vmatpush.bf16.msra.mxu0 %v445
    %488 = vmatpush.bf16.msra.mxu0 %v444
    %489 = vmatmul.bf16.gmra.mxu0 %v28
    %v490 = vpop.f32.mrf.mxu0
    %v491 = vadd.f32 %v478, %v490
    %v492 = vpop.f32.mrf.mxu0
    %493 = vdwg.mxu0
    %v494 = vmax.f32 %v338, %v491
    %s495 = scalar_lea.vmem %s1, 384
    %v496 = vld [vmem:[%s495] sm:$0xf]
    %v497 = vld [vmem:[%s495 + $0x4] sm:$0xf]
    %v498 = vld [vmem:[%s495 + $0x8] sm:$0xf]
    %v499 = vld [vmem:[%s495 + $0xc] sm:$0xf]
    %v500 = vld [vmem:[%s495 + $0x10] sm:$0xf]
    %v501 = vld [vmem:[%s495 + $0x14] sm:$0xf]
    %v502 = vld [vmem:[%s495 + $0x18] sm:$0xf]
    %v503 = vld [vmem:[%s495 + $0x1c] sm:$0xf]
    %v504 = vld [vmem:[%s495 + $0x20] sm:$0xf]
    %v505 = vld [vmem:[%s495 + $0x24] sm:$0xf]
    %v506 = vld [vmem:[%s495 + $0x28] sm:$0xf]
    %v507 = vld [vmem:[%s495 + $0x2c] sm:$0xf]
    %v508 = vld [vmem:[%s495 + $0x30] sm:$0xf]
    %v509 = vld [vmem:[%s495 + $0x34] sm:$0xf]
    %v510 = vld [vmem:[%s495 + $0x38] sm:$0xf]
    %v511 = vld [vmem:[%s495 + $0x3c] sm:$0xf]
    %v512 = vld [vmem:[%s495 + $0x40] sm:$0xf]
    %v513 = vld [vmem:[%s495 + $0x44] sm:$0xf]
    %v514 = vld [vmem:[%s495 + $0x48] sm:$0xf]
    %v515 = vld [vmem:[%s495 + $0x4c] sm:$0xf]
    %v516 = vld [vmem:[%s495 + $0x50] sm:$0xf]
    %v517 = vld [vmem:[%s495 + $0x54] sm:$0xf]
    %v518 = vld [vmem:[%s495 + $0x58] sm:$0xf]
    %v519 = vld [vmem:[%s495 + $0x5c] sm:$0xf]
    %v520 = vld [vmem:[%s495 + $0x60] sm:$0xf]
    %v521 = vld [vmem:[%s495 + $0x64] sm:$0xf]
    %v522 = vld [vmem:[%s495 + $0x68] sm:$0xf]
    %v523 = vld [vmem:[%s495 + $0x6c] sm:$0xf]
    %v524 = vld [vmem:[%s495 + $0x70] sm:$0xf]
    %v525 = vld [vmem:[%s495 + $0x74] sm:$0xf]
    %v526 = vld [vmem:[%s495 + $0x78] sm:$0xf]
    %v527 = vld [vmem:[%s495 + $0x7c] sm:$0xf]
    %v560 = vunpack.c.l.b16 %v496
    %v561 = vunpack.c.l.b16 %v497
    %v562 = vunpack.c.l.b16 %v498
    %v563 = vunpack.c.l.b16 %v499
    %v564 = vunpack.c.l.b16 %v500
    %v565 = vunpack.c.l.b16 %v501
    %v566 = vunpack.c.l.b16 %v502
    %v567 = vunpack.c.l.b16 %v503
    %v568 = vunpack.c.l.b16 %v504
    %v569 = vunpack.c.l.b16 %v505
    %v570 = vunpack.c.l.b16 %v506
    %v571 = vunpack.c.l.b16 %v507
    %v572 = vunpack.c.l.b16 %v508
    %v573 = vunpack.c.l.b16 %v509
    %v574 = vunpack.c.l.b16 %v510
    %v575 = vunpack.c.l.b16 %v511
    %v576 = vunpack.c.l.b16 %v512
    %v577 = vunpack.c.l.b16 %v513
    %v578 = vunpack.c.l.b16 %v514
    %v579 = vunpack.c.l.b16 %v515
    %v580 = vunpack.c.l.b16 %v516
    %v581 = vunpack.c.l.b16 %v517
    %v582 = vunpack.c.l.b16 %v518
    %v583 = vunpack.c.l.b16 %v519
    %v584 = vunpack.c.l.b16 %v520
    %v585 = vunpack.c.l.b16 %v521
    %v586 = vunpack.c.l.b16 %v522
    %v587 = vunpack.c.l.b16 %v523
    %v588 = vunpack.c.l.b16 %v524
    %v589 = vunpack.c.l.b16 %v525
    %v590 = vunpack.c.l.b16 %v526
    %v591 = vunpack.c.l.b16 %v527
    %v592 = vpack.c.b16 %v561, %v560
    %v593 = vpack.c.b16 %v563, %v562
    %v594 = vpack.c.b16 %v565, %v564
    %v595 = vpack.c.b16 %v567, %v566
    %v596 = vpack.c.b16 %v569, %v568
    %v597 = vpack.c.b16 %v571, %v570
    %v598 = vpack.c.b16 %v573, %v572
    %v599 = vpack.c.b16 %v575, %v574
    %v600 = vpack.c.b16 %v577, %v576
    %v601 = vpack.c.b16 %v579, %v578
    %v602 = vpack.c.b16 %v581, %v580
    %v603 = vpack.c.b16 %v583, %v582
    %v604 = vpack.c.b16 %v585, %v584
    %v605 = vpack.c.b16 %v587, %v586
    %v606 = vpack.c.b16 %v589, %v588
    %v607 = vpack.c.b16 %v591, %v590
    %624 = vmatpush.bf16.msra.mxu0 %v599
    %625 = vmatpush.bf16.msra.mxu0 %v598
    %626 = vmatpush.bf16.msra.mxu0 %v597
    %627 = vmatpush.bf16.msra.mxu0 %v596
    %628 = vmatpush.bf16.msra.mxu0 %v595
    %629 = vmatpush.bf16.msra.mxu0 %v594
    %630 = vmatpush.bf16.msra.mxu0 %v593
    %631 = vmatpush.bf16.msra.mxu0 %v592
    %632 = vmatmul.bf16.gmra.mxu0 %v27
    %v633 = vpop.f32.mrf.mxu0
    %v634 = vadd.f32 0.0, %v633
    %v635 = vpop.f32.mrf.mxu0
    %636 = vdwg.mxu0
    %637 = vmatpush.bf16.msra.mxu0 %v607
    %638 = vmatpush.bf16.msra.mxu0 %v606
    %639 = vmatpush.bf16.msra.mxu0 %v605
    %640 = vmatpush.bf16.msra.mxu0 %v604
    %641 = vmatpush.bf16.msra.mxu0 %v603
    %642 = vmatpush.bf16.msra.mxu0 %v602
    %643 = vmatpush.bf16.msra.mxu0 %v601
    %644 = vmatpush.bf16.msra.mxu0 %v600
    %645 = vmatmul.bf16.gmra.mxu0 %v28
    %v646 = vpop.f32.mrf.mxu0
    %v647 = vadd.f32 %v634, %v646
    %v648 = vpop.f32.mrf.mxu0
    %649 = vdwg.mxu0
    %v650 = vmax.f32 %v494, %v647
    %v651 = vpack.c.bf16 %v650, %v650
    %v652 = vld [vmem:[%s2] sm:$0xf]
    %v653 = vld [vmem:[%s2 + $0x4] sm:$0xf]
    %v654 = vld [vmem:[%s2 + $0x8] sm:$0xf]
    %v655 = vld [vmem:[%s2 + $0xc] sm:$0xf]
    %v656 = vld [vmem:[%s2 + $0x10] sm:$0xf]
    %v657 = vld [vmem:[%s2 + $0x14] sm:$0xf]
    %v658 = vld [vmem:[%s2 + $0x18] sm:$0xf]
    %v659 = vld [vmem:[%s2 + $0x1c] sm:$0xf]
    %v668 = vunpack.c.l.b16 %v652
    %v669 = vunpack.c.l.b16 %v653
    %v670 = vunpack.c.l.b16 %v654
    %v671 = vunpack.c.l.b16 %v655
    %v672 = vunpack.c.l.b16 %v656
    %v673 = vunpack.c.l.b16 %v657
    %v674 = vunpack.c.l.b16 %v658
    %v675 = vunpack.c.l.b16 %v659
    %v676 = vpack.c.b16 %v669, %v668
    %v677 = vpack.c.b16 %v671, %v670
    %v678 = vpack.c.b16 %v673, %v672
    %v679 = vpack.c.b16 %v675, %v674
    %vm684 = vcmask 523264
    %v686 = vsel %vm684, %v651, 0
    %688 = vmatpush.bf16.msra.mxu0 0
    %689 = vmatpush.bf16.msra.mxu0 0
    %690 = vmatpush.bf16.msra.mxu0 0
    %691 = vmatpush.bf16.msra.mxu0 0
    %692 = vmatpush.bf16.msra.mxu0 %v679
    %693 = vmatpush.bf16.msra.mxu0 %v678
    %694 = vmatpush.bf16.msra.mxu0 %v677
    %695 = vmatpush.bf16.msra.mxu0 %v676
    %696 = vmatmul.bf16.gmra.mxu0 %v686
    %v697 = vpop.f32.mrf.mxu0
    %v698 = vadd.f32 0.0, %v697
    %v699 = vpop.f32.mrf.mxu0
    %700 = vdwg.mxu0
    %v701 = vpack.c.bf16 %v698, %v698
    %v702 = vld [vmem:[%s3] sm:$0xf]
    %s703 = scalar_lea.vmem %s2, 32
    %v704 = vld [vmem:[%s703] sm:$0xf]
    %v705 = vld [vmem:[%s703 + $0x4] sm:$0xf]
    %v706 = vld [vmem:[%s703 + $0x8] sm:$0xf]
    %v707 = vld [vmem:[%s703 + $0xc] sm:$0xf]
    %v708 = vld [vmem:[%s703 + $0x10] sm:$0xf]
    %v709 = vld [vmem:[%s703 + $0x14] sm:$0xf]
    %v710 = vld [vmem:[%s703 + $0x18] sm:$0xf]
    %v711 = vld [vmem:[%s703 + $0x1c] sm:$0xf]
    %v720 = vunpack.c.l.b16 %v704
    %v721 = vunpack.c.l.b16 %v705
    %v722 = vunpack.c.l.b16 %v706
    %v723 = vunpack.c.l.b16 %v707
    %v724 = vunpack.c.l.b16 %v708
    %v725 = vunpack.c.l.b16 %v709
    %v726 = vunpack.c.l.b16 %v710
    %v727 = vunpack.c.l.b16 %v711
    %v728 = vpack.c.b16 %v721, %v720
    %v729 = vpack.c.b16 %v723, %v722
    %v730 = vpack.c.b16 %v725, %v724
    %v731 = vpack.c.b16 %v727, %v726
    %736 = vmatpush.bf16.msra.mxu0 0
    %737 = vmatpush.bf16.msra.mxu0 0
    %738 = vmatpush.bf16.msra.mxu0 0
    %739 = vmatpush.bf16.msra.mxu0 0
    %740 = vmatpush.bf16.msra.mxu0 %v731
    %741 = vmatpush.bf16.msra.mxu0 %v730
    %742 = vmatpush.bf16.msra.mxu0 %v729
    %743 = vmatpush.bf16.msra.mxu0 %v728
    %744 = vmatmul.bf16.gmra.mxu0 %v686
    %v745 = vpop.f32.mrf.mxu0
    %v746 = vadd.f32 0.0, %v745
    %v747 = vpop.f32.mrf.mxu0
    %748 = vdwg.mxu0
    %v749 = vpack.c.bf16 %v746, %v746
    %s750 = scalar_lea.vmem %s3, 4
    %v751 = vld [vmem:[%s750] sm:$0xf]
    %vm752 = vcmask 64512
    %v754 = vsel %vm752, %v751, 0
    %vm756 = vcmask 1043456
    %v758 = vsel %vm756, %v749, 0
    %760 = vmatpush.bf16.msra.mxu0 0
    %761 = vmatpush.bf16.msra.mxu0 0
    %762 = vmatpush.bf16.msra.mxu0 0
    %763 = vmatpush.bf16.msra.mxu0 0
    %764 = vmatpush.bf16.msra.mxu0 0
    %765 = vmatpush.bf16.msra.mxu0 0
    %766 = vmatpush.bf16.msra.mxu0 0
    %767 = vmatpush.bf16.msra.mxu0 %v758
    %768 = vmatmul.bf16.gmra.mxu0 %v754
    %v769 = vpop.f32.mrf.mxu0
    %v770 = vadd.f32 0.0, %v769
    %v771 = vpop.f32.mrf.mxu0
    %772 = vdwg.mxu0
    %v774 = vsel %vm752, %v702, 0
    %v777 = vsel %vm756, %v701, 0
    %779 = vmatpush.bf16.msra.mxu0 0
    %780 = vmatpush.bf16.msra.mxu0 0
    %781 = vmatpush.bf16.msra.mxu0 0
    %782 = vmatpush.bf16.msra.mxu0 0
    %783 = vmatpush.bf16.msra.mxu0 0
    %784 = vmatpush.bf16.msra.mxu0 0
    %785 = vmatpush.bf16.msra.mxu0 0
    %786 = vmatpush.bf16.msra.mxu0 %v777
    %787 = vmatmul.bf16.gmra.mxu0 %v774
    %v788 = vpop.f32.mrf.mxu0
    %v789 = vadd.f32 %v770, %v788
    %v790 = vpop.f32.mrf.mxu0
    %791 = vdwg.mxu0
    %s792 = scalar_lea.vmem %s2, 64
    %v793 = vld [vmem:[%s792] sm:$0xf]
    %v794 = vld [vmem:[%s792 + $0x4] sm:$0xf]
    %v795 = vld [vmem:[%s792 + $0x8] sm:$0xf]
    %v796 = vld [vmem:[%s792 + $0xc] sm:$0xf]
    %v797 = vld [vmem:[%s792 + $0x10] sm:$0xf]
    %v798 = vld [vmem:[%s792 + $0x14] sm:$0xf]
    %v799 = vld [vmem:[%s792 + $0x18] sm:$0xf]
    %v800 = vld [vmem:[%s792 + $0x1c] sm:$0xf]
    %v809 = vunpack.c.l.b16 %v793
    %v810 = vunpack.c.l.b16 %v794
    %v811 = vunpack.c.l.b16 %v795
    %v812 = vunpack.c.l.b16 %v796
    %v813 = vunpack.c.l.b16 %v797
    %v814 = vunpack.c.l.b16 %v798
    %v815 = vunpack.c.l.b16 %v799
    %v816 = vunpack.c.l.b16 %v800
    %v817 = vpack.c.b16 %v810, %v809
    %v818 = vpack.c.b16 %v812, %v811
    %v819 = vpack.c.b16 %v814, %v813
    %v820 = vpack.c.b16 %v816, %v815
    %825 = vmatpush.bf16.msra.mxu0 0
    %826 = vmatpush.bf16.msra.mxu0 0
    %827 = vmatpush.bf16.msra.mxu0 0
    %828 = vmatpush.bf16.msra.mxu0 0
    %829 = vmatpush.bf16.msra.mxu0 %v820
    %830 = vmatpush.bf16.msra.mxu0 %v819
    %831 = vmatpush.bf16.msra.mxu0 %v818
    %832 = vmatpush.bf16.msra.mxu0 %v817
    %833 = vmatmul.bf16.gmra.mxu0 %v686
    %v834 = vpop.f32.mrf.mxu0
    %v835 = vadd.f32 0.0, %v834
    %v836 = vpop.f32.mrf.mxu0
    %837 = vdwg.mxu0
    %v838 = vpack.c.bf16 %v835, %v835
    %s839 = scalar_lea.vmem %s3, 8
    %v840 = vld [vmem:[%s839] sm:$0xf]
    %v842 = vsel %vm752, %v840, 0
    %v845 = vsel %vm756, %v838, 0
    %847 = vmatpush.bf16.msra.mxu0 0
    %848 = vmatpush.bf16.msra.mxu0 0
    %849 = vmatpush.bf16.msra.mxu0 0
    %850 = vmatpush.bf16.msra.mxu0 0
    %851 = vmatpush.bf16.msra.mxu0 0
    %852 = vmatpush.bf16.msra.mxu0 0
    %853 = vmatpush.bf16.msra.mxu0 0
    %854 = vmatpush.bf16.msra.mxu0 %v845
    %855 = vmatmul.bf16.gmra.mxu0 %v842
    %v856 = vpop.f32.mrf.mxu0
    %v857 = vadd.f32 0.0, %v856
    %v858 = vpop.f32.mrf.mxu0
    %859 = vdwg.mxu0
    %v860 = vadd.f32 %v789, %v857
    %s861 = scalar_lea.vmem %s2, 96
    %v862 = vld [vmem:[%s861] sm:$0xf]
    %v863 = vld [vmem:[%s861 + $0x4] sm:$0xf]
    %v864 = vld [vmem:[%s861 + $0x8] sm:$0xf]
    %v865 = vld [vmem:[%s861 + $0xc] sm:$0xf]
    %v866 = vld [vmem:[%s861 + $0x10] sm:$0xf]
    %v867 = vld [vmem:[%s861 + $0x14] sm:$0xf]
    %v868 = vld [vmem:[%s861 + $0x18] sm:$0xf]
    %v869 = vld [vmem:[%s861 + $0x1c] sm:$0xf]
    %v878 = vunpack.c.l.b16 %v862
    %v879 = vunpack.c.l.b16 %v863
    %v880 = vunpack.c.l.b16 %v864
    %v881 = vunpack.c.l.b16 %v865
    %v882 = vunpack.c.l.b16 %v866
    %v883 = vunpack.c.l.b16 %v867
    %v884 = vunpack.c.l.b16 %v868
    %v885 = vunpack.c.l.b16 %v869
    %v886 = vpack.c.b16 %v879, %v878
    %v887 = vpack.c.b16 %v881, %v880
    %v888 = vpack.c.b16 %v883, %v882
    %v889 = vpack.c.b16 %v885, %v884
    %894 = vmatpush.bf16.msra.mxu0 0
    %895 = vmatpush.bf16.msra.mxu0 0
    %896 = vmatpush.bf16.msra.mxu0 0
    %897 = vmatpush.bf16.msra.mxu0 0
    %898 = vmatpush.bf16.msra.mxu0 %v889
    %899 = vmatpush.bf16.msra.mxu0 %v888
    %900 = vmatpush.bf16.msra.mxu0 %v887
    %901 = vmatpush.bf16.msra.mxu0 %v886
    %902 = vmatmul.bf16.gmra.mxu0 %v686
    %v903 = vpop.f32.mrf.mxu0
    %v904 = vadd.f32 0.0, %v903
    %v905 = vpop.f32.mrf.mxu0
    %906 = vdwg.mxu0
    %v907 = vpack.c.bf16 %v904, %v904
    %s908 = scalar_lea.vmem %s3, 12
    %v909 = vld [vmem:[%s908] sm:$0xf]
    %v911 = vsel %vm752, %v909, 0
    %v914 = vsel %vm756, %v907, 0
    %916 = vmatpush.bf16.msra.mxu0 0
    %917 = vmatpush.bf16.msra.mxu0 0
    %918 = vmatpush.bf16.msra.mxu0 0
    %919 = vmatpush.bf16.msra.mxu0 0
    %920 = vmatpush.bf16.msra.mxu0 0
    %921 = vmatpush.bf16.msra.mxu0 0
    %922 = vmatpush.bf16.msra.mxu0 0
    %923 = vmatpush.bf16.msra.mxu0 %v914
    %924 = vmatmul.bf16.gmra.mxu0 %v911
    %v925 = vpop.f32.mrf.mxu0
    %v926 = vadd.f32 0.0, %v925
    %v927 = vpop.f32.mrf.mxu0
    %928 = vdwg.mxu0
    %v929 = vadd.f32 %v860, %v926
    %s930 = scalar_lea.vmem %s2, 128
    %v931 = vld [vmem:[%s930] sm:$0xf]
    %v932 = vld [vmem:[%s930 + $0x4] sm:$0xf]
    %v933 = vld [vmem:[%s930 + $0x8] sm:$0xf]
    %v934 = vld [vmem:[%s930 + $0xc] sm:$0xf]
    %v935 = vld [vmem:[%s930 + $0x10] sm:$0xf]
    %v936 = vld [vmem:[%s930 + $0x14] sm:$0xf]
    %v937 = vld [vmem:[%s930 + $0x18] sm:$0xf]
    %v938 = vld [vmem:[%s930 + $0x1c] sm:$0xf]
    %v947 = vunpack.c.l.b16 %v931
    %v948 = vunpack.c.l.b16 %v932
    %v949 = vunpack.c.l.b16 %v933
    %v950 = vunpack.c.l.b16 %v934
    %v951 = vunpack.c.l.b16 %v935
    %v952 = vunpack.c.l.b16 %v936
    %v953 = vunpack.c.l.b16 %v937
    %v954 = vunpack.c.l.b16 %v938
    %v955 = vpack.c.b16 %v948, %v947
    %v956 = vpack.c.b16 %v950, %v949
    %v957 = vpack.c.b16 %v952, %v951
    %v958 = vpack.c.b16 %v954, %v953
    %963 = vmatpush.bf16.msra.mxu0 0
    %964 = vmatpush.bf16.msra.mxu0 0
    %965 = vmatpush.bf16.msra.mxu0 0
    %966 = vmatpush.bf16.msra.mxu0 0
    %967 = vmatpush.bf16.msra.mxu0 %v958
    %968 = vmatpush.bf16.msra.mxu0 %v957
    %969 = vmatpush.bf16.msra.mxu0 %v956
    %970 = vmatpush.bf16.msra.mxu0 %v955
    %971 = vmatmul.bf16.gmra.mxu0 %v686
    %v972 = vpop.f32.mrf.mxu0
    %v973 = vadd.f32 0.0, %v972
    %v974 = vpop.f32.mrf.mxu0
    %975 = vdwg.mxu0
    %v976 = vpack.c.bf16 %v973, %v973
    %s977 = scalar_lea.vmem %s3, 16
    %v978 = vld [vmem:[%s977] sm:$0xf]
    %v980 = vsel %vm752, %v978, 0
    %v983 = vsel %vm756, %v976, 0
    %985 = vmatpush.bf16.msra.mxu0 0
    %986 = vmatpush.bf16.msra.mxu0 0
    %987 = vmatpush.bf16.msra.mxu0 0
    %988 = vmatpush.bf16.msra.mxu0 0
    %989 = vmatpush.bf16.msra.mxu0 0
    %990 = vmatpush.bf16.msra.mxu0 0
    %991 = vmatpush.bf16.msra.mxu0 0
    %992 = vmatpush.bf16.msra.mxu0 %v983
    %993 = vmatmul.bf16.gmra.mxu0 %v980
    %v994 = vpop.f32.mrf.mxu0
    %v995 = vadd.f32 0.0, %v994
    %v996 = vpop.f32.mrf.mxu0
    %997 = vdwg.mxu0
    %v998 = vadd.f32 %v929, %v995
    %s999 = scalar_lea.vmem %s2, 160
    %v1000 = vld [vmem:[%s999] sm:$0xf]
    %v1001 = vld [vmem:[%s999 + $0x4] sm:$0xf]
    %v1002 = vld [vmem:[%s999 + $0x8] sm:$0xf]
    %v1003 = vld [vmem:[%s999 + $0xc] sm:$0xf]
    %v1004 = vld [vmem:[%s999 + $0x10] sm:$0xf]
    %v1005 = vld [vmem:[%s999 + $0x14] sm:$0xf]
    %v1006 = vld [vmem:[%s999 + $0x18] sm:$0xf]
    %v1007 = vld [vmem:[%s999 + $0x1c] sm:$0xf]
    %v1016 = vunpack.c.l.b16 %v1000
    %v1017 = vunpack.c.l.b16 %v1001
    %v1018 = vunpack.c.l.b16 %v1002
    %v1019 = vunpack.c.l.b16 %v1003
    %v1020 = vunpack.c.l.b16 %v1004
    %v1021 = vunpack.c.l.b16 %v1005
    %v1022 = vunpack.c.l.b16 %v1006
    %v1023 = vunpack.c.l.b16 %v1007
    %v1024 = vpack.c.b16 %v1017, %v1016
    %v1025 = vpack.c.b16 %v1019, %v1018
    %v1026 = vpack.c.b16 %v1021, %v1020
    %v1027 = vpack.c.b16 %v1023, %v1022
    %1032 = vmatpush.bf16.msra.mxu0 0
    %1033 = vmatpush.bf16.msra.mxu0 0
    %1034 = vmatpush.bf16.msra.mxu0 0
    %1035 = vmatpush.bf16.msra.mxu0 0
    %1036 = vmatpush.bf16.msra.mxu0 %v1027
    %1037 = vmatpush.bf16.msra.mxu0 %v1026
    %1038 = vmatpush.bf16.msra.mxu0 %v1025
    %1039 = vmatpush.bf16.msra.mxu0 %v1024
    %1040 = vmatmul.bf16.gmra.mxu0 %v686
    %v1041 = vpop.f32.mrf.mxu0
    %v1042 = vadd.f32 0.0, %v1041
    %v1043 = vpop.f32.mrf.mxu0
    %1044 = vdwg.mxu0
    %v1045 = vpack.c.bf16 %v1042, %v1042
    %s1046 = scalar_lea.vmem %s3, 20
    %v1047 = vld [vmem:[%s1046] sm:$0xf]
    %v1049 = vsel %vm752, %v1047, 0
    %v1052 = vsel %vm756, %v1045, 0
    %1054 = vmatpush.bf16.msra.mxu0 0
    %1055 = vmatpush.bf16.msra.mxu0 0
    %1056 = vmatpush.bf16.msra.mxu0 0
    %1057 = vmatpush.bf16.msra.mxu0 0
    %1058 = vmatpush.bf16.msra.mxu0 0
    %1059 = vmatpush.bf16.msra.mxu0 0
    %1060 = vmatpush.bf16.msra.mxu0 0
    %1061 = vmatpush.bf16.msra.mxu0 %v1052
    %1062 = vmatmul.bf16.gmra.mxu0 %v1049
    %v1063 = vpop.f32.mrf.mxu0
    %v1064 = vadd.f32 0.0, %v1063
    %v1065 = vpop.f32.mrf.mxu0
    %1066 = vdwg.mxu0
    %v1067 = vadd.f32 %v998, %v1064
    %s1068 = scalar_lea.vmem %s2, 192
    %v1069 = vld [vmem:[%s1068] sm:$0xf]
    %v1070 = vld [vmem:[%s1068 + $0x4] sm:$0xf]
    %v1071 = vld [vmem:[%s1068 + $0x8] sm:$0xf]
    %v1072 = vld [vmem:[%s1068 + $0xc] sm:$0xf]
    %v1073 = vld [vmem:[%s1068 + $0x10] sm:$0xf]
    %v1074 = vld [vmem:[%s1068 + $0x14] sm:$0xf]
    %v1075 = vld [vmem:[%s1068 + $0x18] sm:$0xf]
    %v1076 = vld [vmem:[%s1068 + $0x1c] sm:$0xf]
    %v1085 = vunpack.c.l.b16 %v1069
    %v1086 = vunpack.c.l.b16 %v1070
    %v1087 = vunpack.c.l.b16 %v1071
    %v1088 = vunpack.c.l.b16 %v1072
    %v1089 = vunpack.c.l.b16 %v1073
    %v1090 = vunpack.c.l.b16 %v1074
    %v1091 = vunpack.c.l.b16 %v1075
    %v1092 = vunpack.c.l.b16 %v1076
    %v1093 = vpack.c.b16 %v1086, %v1085
    %v1094 = vpack.c.b16 %v1088, %v1087
    %v1095 = vpack.c.b16 %v1090, %v1089
    %v1096 = vpack.c.b16 %v1092, %v1091
    %1101 = vmatpush.bf16.msra.mxu0 0
    %1102 = vmatpush.bf16.msra.mxu0 0
    %1103 = vmatpush.bf16.msra.mxu0 0
    %1104 = vmatpush.bf16.msra.mxu0 0
    %1105 = vmatpush.bf16.msra.mxu0 %v1096
    %1106 = vmatpush.bf16.msra.mxu0 %v1095
    %1107 = vmatpush.bf16.msra.mxu0 %v1094
    %1108 = vmatpush.bf16.msra.mxu0 %v1093
    %1109 = vmatmul.bf16.gmra.mxu0 %v686
    %v1110 = vpop.f32.mrf.mxu0
    %v1111 = vadd.f32 0.0, %v1110
    %v1112 = vpop.f32.mrf.mxu0
    %1113 = vdwg.mxu0
    %v1114 = vpack.c.bf16 %v1111, %v1111
    %s1115 = scalar_lea.vmem %s3, 24
    %v1116 = vld [vmem:[%s1115] sm:$0xf]
    %v1118 = vsel %vm752, %v1116, 0
    %v1121 = vsel %vm756, %v1114, 0
    %1123 = vmatpush.bf16.msra.mxu0 0
    %1124 = vmatpush.bf16.msra.mxu0 0
    %1125 = vmatpush.bf16.msra.mxu0 0
    %1126 = vmatpush.bf16.msra.mxu0 0
    %1127 = vmatpush.bf16.msra.mxu0 0
    %1128 = vmatpush.bf16.msra.mxu0 0
    %1129 = vmatpush.bf16.msra.mxu0 0
    %1130 = vmatpush.bf16.msra.mxu0 %v1121
    %1131 = vmatmul.bf16.gmra.mxu0 %v1118
    %v1132 = vpop.f32.mrf.mxu0
    %v1133 = vadd.f32 0.0, %v1132
    %v1134 = vpop.f32.mrf.mxu0
    %1135 = vdwg.mxu0
    %v1136 = vadd.f32 %v1067, %v1133
    %s1137 = scalar_lea.vmem %s2, 224
    %v1138 = vld [vmem:[%s1137] sm:$0xf]
    %v1139 = vld [vmem:[%s1137 + $0x4] sm:$0xf]
    %v1140 = vld [vmem:[%s1137 + $0x8] sm:$0xf]
    %v1141 = vld [vmem:[%s1137 + $0xc] sm:$0xf]
    %v1142 = vld [vmem:[%s1137 + $0x10] sm:$0xf]
    %v1143 = vld [vmem:[%s1137 + $0x14] sm:$0xf]
    %v1144 = vld [vmem:[%s1137 + $0x18] sm:$0xf]
    %v1145 = vld [vmem:[%s1137 + $0x1c] sm:$0xf]
    %v1154 = vunpack.c.l.b16 %v1138
    %v1155 = vunpack.c.l.b16 %v1139
    %v1156 = vunpack.c.l.b16 %v1140
    %v1157 = vunpack.c.l.b16 %v1141
    %v1158 = vunpack.c.l.b16 %v1142
    %v1159 = vunpack.c.l.b16 %v1143
    %v1160 = vunpack.c.l.b16 %v1144
    %v1161 = vunpack.c.l.b16 %v1145
    %v1162 = vpack.c.b16 %v1155, %v1154
    %v1163 = vpack.c.b16 %v1157, %v1156
    %v1164 = vpack.c.b16 %v1159, %v1158
    %v1165 = vpack.c.b16 %v1161, %v1160
    %1170 = vmatpush.bf16.msra.mxu0 0
    %1171 = vmatpush.bf16.msra.mxu0 0
    %1172 = vmatpush.bf16.msra.mxu0 0
    %1173 = vmatpush.bf16.msra.mxu0 0
    %1174 = vmatpush.bf16.msra.mxu0 %v1165
    %1175 = vmatpush.bf16.msra.mxu0 %v1164
    %1176 = vmatpush.bf16.msra.mxu0 %v1163
    %1177 = vmatpush.bf16.msra.mxu0 %v1162
    %1178 = vmatmul.bf16.gmra.mxu0 %v686
    %v1179 = vpop.f32.mrf.mxu0
    %v1180 = vadd.f32 0.0, %v1179
    %v1181 = vpop.f32.mrf.mxu0
    %1182 = vdwg.mxu0
    %v1183 = vpack.c.bf16 %v1180, %v1180
    %s1184 = scalar_lea.vmem %s3, 28
    %v1185 = vld [vmem:[%s1184] sm:$0xf]
    %v1187 = vsel %vm752, %v1185, 0
    %v1190 = vsel %vm756, %v1183, 0
    %1192 = vmatpush.bf16.msra.mxu0 0
    %1193 = vmatpush.bf16.msra.mxu0 0
    %1194 = vmatpush.bf16.msra.mxu0 0
    %1195 = vmatpush.bf16.msra.mxu0 0
    %1196 = vmatpush.bf16.msra.mxu0 0
    %1197 = vmatpush.bf16.msra.mxu0 0
    %1198 = vmatpush.bf16.msra.mxu0 0
    %1199 = vmatpush.bf16.msra.mxu0 %v1190
    %1200 = vmatmul.bf16.gmra.mxu0 %v1187
    %v1201 = vpop.f32.mrf.mxu0
    %v1202 = vadd.f32 0.0, %v1201
    %v1203 = vpop.f32.mrf.mxu0
    %1204 = vdwg.mxu0
    %v1205 = vadd.f32 %v1136, %v1202
    %s1206 = scalar_lea.vmem %s2, 256
    %v1207 = vld [vmem:[%s1206] sm:$0xf]
    %v1208 = vld [vmem:[%s1206 + $0x4] sm:$0xf]
    %v1209 = vld [vmem:[%s1206 + $0x8] sm:$0xf]
    %v1210 = vld [vmem:[%s1206 + $0xc] sm:$0xf]
    %v1211 = vld [vmem:[%s1206 + $0x10] sm:$0xf]
    %v1212 = vld [vmem:[%s1206 + $0x14] sm:$0xf]
    %v1213 = vld [vmem:[%s1206 + $0x18] sm:$0xf]
    %v1214 = vld [vmem:[%s1206 + $0x1c] sm:$0xf]
    %v1223 = vunpack.c.l.b16 %v1207
    %v1224 = vunpack.c.l.b16 %v1208
    %v1225 = vunpack.c.l.b16 %v1209
    %v1226 = vunpack.c.l.b16 %v1210
    %v1227 = vunpack.c.l.b16 %v1211
    %v1228 = vunpack.c.l.b16 %v1212
    %v1229 = vunpack.c.l.b16 %v1213
    %v1230 = vunpack.c.l.b16 %v1214
    %v1231 = vpack.c.b16 %v1224, %v1223
    %v1232 = vpack.c.b16 %v1226, %v1225
    %v1233 = vpack.c.b16 %v1228, %v1227
    %v1234 = vpack.c.b16 %v1230, %v1229
    %1239 = vmatpush.bf16.msra.mxu0 0
    %1240 = vmatpush.bf16.msra.mxu0 0
    %1241 = vmatpush.bf16.msra.mxu0 0
    %1242 = vmatpush.bf16.msra.mxu0 0
    %1243 = vmatpush.bf16.msra.mxu0 %v1234
    %1244 = vmatpush.bf16.msra.mxu0 %v1233
    %1245 = vmatpush.bf16.msra.mxu0 %v1232
    %1246 = vmatpush.bf16.msra.mxu0 %v1231
    %1247 = vmatmul.bf16.gmra.mxu0 %v686
    %v1248 = vpop.f32.mrf.mxu0
    %v1249 = vadd.f32 0.0, %v1248
    %v1250 = vpop.f32.mrf.mxu0
    %1251 = vdwg.mxu0
    %v1252 = vpack.c.bf16 %v1249, %v1249
    %s1253 = scalar_lea.vmem %s3, 32
    %v1254 = vld [vmem:[%s1253] sm:$0xf]
    %v1256 = vsel %vm752, %v1254, 0
    %v1259 = vsel %vm756, %v1252, 0
    %1261 = vmatpush.bf16.msra.mxu0 0
    %1262 = vmatpush.bf16.msra.mxu0 0
    %1263 = vmatpush.bf16.msra.mxu0 0
    %1264 = vmatpush.bf16.msra.mxu0 0
    %1265 = vmatpush.bf16.msra.mxu0 0
    %1266 = vmatpush.bf16.msra.mxu0 0
    %1267 = vmatpush.bf16.msra.mxu0 0
    %1268 = vmatpush.bf16.msra.mxu0 %v1259
    %1269 = vmatmul.bf16.gmra.mxu0 %v1256
    %v1270 = vpop.f32.mrf.mxu0
    %v1271 = vadd.f32 0.0, %v1270
    %v1272 = vpop.f32.mrf.mxu0
    %1273 = vdwg.mxu0
    %v1274 = vadd.f32 %v1205, %v1271
    %v1275 = vld [vmem:[%s4] sm:$0xff]
    %1277 = vset.pattern.permute.xlu0 0
    %1278 = vperm.xlu0 %1277, %v1275
    %v1279 = vpop.permute.xlu0 %1278
    %v1281 = vadd.f32 %v1274, %v1279
    %v1282 = vpack.c.bf16 %v1281, %v1281
    %v1283 = vld [vmem:[%s5] sm:$0xff]
    %v1284 = vld [vmem:[%s5 + $0x8] sm:$0xff]
    %v1285 = vld [vmem:[%s5 + $0x10] sm:$0xff]
    %v1286 = vld [vmem:[%s5 + $0x18] sm:$0xff]
    %v1287 = vld [vmem:[%s5 + $0x20] sm:$0xff]
    %v1288 = vld [vmem:[%s5 + $0x28] sm:$0xff]
    %v1289 = vld [vmem:[%s5 + $0x30] sm:$0xff]
    %v1290 = vld [vmem:[%s5 + $0x38] sm:$0xff]
    %v1299 = vunpack.c.l.b16 %v1283
    %v1300 = vunpack.c.h.b16 %v1283
    %v1301 = vunpack.c.l.b16 %v1284
    %v1302 = vunpack.c.h.b16 %v1284
    %v1303 = vunpack.c.l.b16 %v1285
    %v1304 = vunpack.c.h.b16 %v1285
    %v1305 = vunpack.c.l.b16 %v1286
    %v1306 = vunpack.c.h.b16 %v1286
    %v1307 = vunpack.c.l.b16 %v1287
    %v1308 = vunpack.c.h.b16 %v1287
    %v1309 = vunpack.c.l.b16 %v1288
    %v1310 = vunpack.c.h.b16 %v1288
    %v1311 = vunpack.c.l.b16 %v1289
    %v1312 = vunpack.c.h.b16 %v1289
    %v1313 = vunpack.c.l.b16 %v1290
    %v1314 = vunpack.c.h.b16 %v1290
    %v1315 = vpack.c.b16 %v1301, %v1299
    %v1316 = vpack.c.b16 %v1302, %v1300
    %v1317 = vpack.c.b16 %v1305, %v1303
    %v1318 = vpack.c.b16 %v1306, %v1304
    %v1319 = vpack.c.b16 %v1309, %v1307
    %v1320 = vpack.c.b16 %v1310, %v1308
    %v1321 = vpack.c.b16 %v1313, %v1311
    %v1322 = vpack.c.b16 %v1314, %v1312
    %v1332 = vsel %vm684, %v1282, 0
    %1334 = vmatpush.bf16.msra.mxu0 0
    %1335 = vmatpush.bf16.msra.mxu0 0
    %1336 = vmatpush.bf16.msra.mxu0 0
    %1337 = vmatpush.bf16.msra.mxu0 0
    %1338 = vmatpush.bf16.msra.mxu0 %v1321
    %1339 = vmatpush.bf16.msra.mxu0 %v1319
    %1340 = vmatpush.bf16.msra.mxu0 %v1317
    %1341 = vmatpush.bf16.msra.mxu0 %v1315
    %1342 = vmatmul.bf16.gmra.mxu0 %v1332
    %v1343 = vpop.f32.mrf.mxu0
    %v1344 = vadd.f32 0.0, %v1343
    %v1345 = vpop.f32.mrf.mxu0
    %1346 = vdwg.mxu0
    %1347 = vmatpush.bf16.msra.mxu0 0
    %1348 = vmatpush.bf16.msra.mxu0 0
    %1349 = vmatpush.bf16.msra.mxu0 0
    %1350 = vmatpush.bf16.msra.mxu0 0
    %1351 = vmatpush.bf16.msra.mxu0 %v1322
    %1352 = vmatpush.bf16.msra.mxu0 %v1320
    %1353 = vmatpush.bf16.msra.mxu0 %v1318
    %1354 = vmatpush.bf16.msra.mxu0 %v1316
    %1355 = vmatmul.bf16.gmra.mxu0 %v1332
    %v1356 = vpop.f32.mrf.mxu0
    %v1357 = vadd.f32 0.0, %v1356
    %v1358 = vpop.f32.mrf.mxu0
    %1359 = vdwg.mxu0
    %v1360 = vxor.u32 %v1344, 2147483648
    %v1361 = vxor.u32 %v1357, 2147483648
    %v1362 = vmul.f32 %v1360, 1.442695
    %v1363 = vpow.pop %v1362
    %v1364 = vmul.f32 %v1361, 1.442695
    %v1365 = vpow.pop %v1364
    %v1366 = vadd.f32 %v1363, 1.0
    %v1367 = vadd.f32 %v1365, 1.0
    %v1368 = vrcp.pop %v1366
    %v1369 = vmul.f32 %v1366, %v1368
    %v1370 = vsub.f32 1.0, %v1369
    %v1371 = vmul.f32 %v1368, %v1370
    %v1372 = vadd.f32 %v1368, %v1371
    %vm1373 = vweird.f32 %v1366
    %vm1374 = vweird.f32 %v1368
    %vm1375 = vmor %vm1373, %vm1374
    %v1376 = vsel %vm1375, %v1368, %v1372
    %v1377 = vand.u32 2147483647, %v1366
    %vm1378 = vcmp.eq.f32.partialorder %v1377, 8.507059e+37
    %v1379 = vand.u32 %v1366, 2147483648
    %v1380 = vor.u32 1.1754944e-38, %v1379
    %v1381 = vsel %vm1378, %v1380, %v1376
    %v1382 = vmul.f32 1.0, %v1381
    %v1383 = vrcp.pop %v1367
    %v1384 = vmul.f32 %v1367, %v1383
    %v1385 = vsub.f32 1.0, %v1384
    %v1386 = vmul.f32 %v1383, %v1385
    %v1387 = vadd.f32 %v1383, %v1386
    %vm1388 = vweird.f32 %v1367
    %vm1389 = vweird.f32 %v1383
    %vm1390 = vmor %vm1388, %vm1389
    %v1391 = vsel %vm1390, %v1383, %v1387
    %v1392 = vand.u32 2147483647, %v1367
    %vm1393 = vcmp.eq.f32.partialorder %v1392, 8.507059e+37
    %v1394 = vand.u32 %v1367, 2147483648
    %v1395 = vor.u32 1.1754944e-38, %v1394
    %v1396 = vsel %vm1393, %v1395, %v1391
    %v1397 = vmul.f32 1.0, %v1396
    %v1398 = vmul.f32 %v25, %v1382
    %v1399 = vmul.f32 %v26, %v1397
    %1400 = vst [vmem:[#allocation2] sm:$0xff] %v1398
    %1401 = vst [vmem:[#allocation2 + $0x8] sm:$0xff] %v1399
    // Predicated region
    $region26: #{tpu_custom_call.1} parent=1 // pred_check
      _
    $region27: #{tpu_custom_call.1} parent=1 // pred_check_branch
      %1403 = sbr.rel (0) target = $region29
    $region28: #{tpu_custom_call.1} parent=1 // pred_region
      %1405 = vsyncadd [#allocation3], 0
      %s1407 = sshll.u32 [#allocation2], 4
      %s1408 = int_to_ptr.vmem [resolvable:$true] %s1407
      %s1409 = sshll.u32 %s6, 4
      %s1410 = int_to_ptr.hbm [resolvable:$true] %s1409
      %1412 = dma.vmem_to_hbm [thread:$0]  %s1408, 256, %s1410, [#allocation3]
    $region29: #{tpu_custom_call.1} parent=1 // pred_fallthru
      _
    // Predicated region
    $region30: #{tpu_custom_call.1} parent=1 // pred_check
      _
    $region31: #{tpu_custom_call.1} parent=1 // pred_check_branch
      %1414 = sbr.rel (0) target = $region33
    $region32: #{tpu_custom_call.1} parent=1 // pred_region
      %1416 = dma.done [#allocation3], 256
    $region33: #{tpu_custom_call.1} parent=1 // pred_fallthru
      _
    %1417 = vsyncpa [#allocation3], 1

</llo_original>
